<compile_context>
chip_gen: v6e
topology: v6e:2x2x1
jax: 0.10.0
libtpu: 0.0.40
codegen_flags: <defaults>
</compile_context>

<pallas_src>
import functools

import jax
import jax.numpy as jnp
from jax import lax
from jax.experimental import pallas as pl
from jax.experimental.pallas import tpu as pltpu


# ---------------------------------------------------------------------------
# Fused kernel: ChebConv+BN+ReLU -> concat -> ChebConv+BN+ReLU
# Activations use the "batch-stacked" layout [V, B*C] (batch folded into lanes)
# so every Laplacian matmul is one [V,V] x [V,B*C] MXU op shared by the batch.
# ---------------------------------------------------------------------------
def _fused_decoder_kernel(lap_ref, xu_ref, cd_ref,
                          w1_ref, g1_ref, beta1_ref,
                          w2_ref, g2_ref, beta2_ref,
                          o_ref, *,
                          kernel_size, batch, f1, f2, eps, compute_dtype):
    f32 = jnp.float32
    K, B = kernel_size, batch
    L = lap_ref[...]                                  # [V, V], compute dtype
    V = L.shape[0]
    inv_n = 1.0 / (B * V)

    def fold_batch(row, c):
        # [1, B*c] -> [1, c] by summing the B batch groups (tiny lane slices).
        acc = row[:, 0:c]
        for b in range(1, B):
            acc = acc + row[:, b * c:(b + 1) * c]
        return acc

    def tile_batch(row):
        # [1, c] -> [1, B*c]
        return jnp.concatenate([row] * B, axis=-1) if B > 1 else row

    def cheb_bn_relu(x_c, w_ref, gamma_ref, beta_ref, c_out):
        """ChebConv (bias-free: it cancels in training BN) + BN + ReLU.

        x_c:   [V, B*C_in] in compute dtype.
        w_ref: [K, B*C_in, B*C_out] block-diagonal-in-batch weights.
        Returns [V, B*C_out] f32.
        """
        # ---- Chebyshev recursion + per-order projection accumulation -------
        #   T_0 = x, T_1 = L x, T_k = 2 L T_{k-1} - T_{k-2};  y = sum_k T_k W_k
        # Carries in f32; each term cast to the matmul dtype exactly once.
        y = jnp.dot(x_c, w_ref[0], preferred_element_type=f32)
        if K > 1:
            t_prev = x_c                                           # T_0
            t_cur_f = jnp.dot(L, x_c, preferred_element_type=f32)  # T_1 (f32)
            t_cur_c = t_cur_f.astype(compute_dtype)
            y = y + jnp.dot(t_cur_c, w_ref[1], preferred_element_type=f32)
            for k in range(2, K):
                t_next_f = (2.0 * jnp.dot(L, t_cur_c,
                                          preferred_element_type=f32)
                            - t_prev)
                t_next_c = t_next_f.astype(compute_dtype)
                y = y + jnp.dot(t_next_c, w_ref[k],
                                preferred_element_type=f32)
                t_prev, t_cur_f, t_cur_c = t_cur_f, t_next_f, t_next_c

        # ---- Training-mode BatchNorm1d over (batch, vertices) + ReLU -------
        # Reduce over V first, fold the B groups on the tiny row; two-pass
        # centered (biased) variance.
        sum_v = jnp.sum(y, axis=0, keepdims=True)             # [1, B*C_out]
        mean = fold_batch(sum_v, c_out) * inv_n                # [1, C_out]
        d = y - tile_batch(mean)                               # centered, f32
        var = fold_batch(jnp.sum(d * d, axis=0, keepdims=True), c_out) * inv_n
        scale = gamma_ref[...] * lax.rsqrt(var + eps)          # [1, C_out]
        return jnp.maximum(d * tile_batch(scale) + tile_batch(beta_ref[...]),
                           0.0)

    # Stage 1: ChebConv(Fin -> F1) + BN + ReLU on the (already unpooled) signal.
    y1 = cheb_bn_relu(xu_ref[...], w1_ref, g1_ref, beta1_ref, f1)

    # Channel concat with the encoder skip connection: a pure lane concat in
    # the stacked layout, done directly in the compute dtype (no f32 round
    # trip of concat_data); the fused stage-2 weight matches this ordering.
    z = jnp.concatenate([y1.astype(compute_dtype), cd_ref[...]], axis=-1)

    # Stage 2: ChebConv(F1 + Fin -> F2) + BN + ReLU.
    o_ref[...] = cheb_bn_relu(z, w2_ref, g2_ref, beta2_ref, f2)


# ---------------------------------------------------------------------------
# Host-side layout helpers (tiny XLA ops at the pallas_call boundary).
# ---------------------------------------------------------------------------
def _stack_batch(x):
    """[B, V, C] -> [V, B*C]  (batch folded into the lane axis)."""
    B, V, C = x.shape
    return jnp.transpose(x, (1, 0, 2)).reshape(V, B * C)


def _unstack_batch(x_s, batch):
    """[V, B*C] -> [B, V, C].
    TODO(synk): downstream decoder blocks could consume the stacked layout
    directly and skip this extra HBM relayout of the output."""
    V, BC = x_s.shape
    return jnp.transpose(x_s.reshape(V, batch, BC // batch), (1, 0, 2))


def _fused_cheb_weight(w, batch, group_sizes):
    """[K, sum(group_sizes), C_out] -> [K, B*sum(group_sizes), B*C_out].

    Block-diagonal in the batch; row ordering matches the kernel's lane layout
    (per order: `batch` blocks of group 0, then group 1, ...).  Note: element
    count scales B^2 — keep only while B*C_out is below the MXU width.
    """
    K, c_in, c_out = w.shape
    assert sum(group_sizes) == c_in
    eye = jnp.eye(batch, dtype=w.dtype)
    pieces, start = [], 0
    for g in group_sizes:
        wg = jnp.einsum("kfo,bc->kbfco", w[:, start:start + g, :], eye)
        pieces.append(wg.reshape(K, batch * g, batch * c_out))
        start += g
    return jnp.concatenate(pieces, axis=1)            # [K, B*c_in, B*c_out]


def _full_spec(arr):
    zeros = (0,) * arr.ndim
    return pl.BlockSpec(arr.shape, lambda i, _z=zeros: _z)


def spherical_cheb_bn_pool_concat(x, concat_data, lap, params, unpool_factor=4,
                                  *, compute_dtype=jnp.bfloat16, eps=1e-5,
                                  vmem_limit_bytes=None):
    B, Vc, f_in = x.shape
    _, V, f_cat = concat_data.shape
    assert V == Vc * unpool_factor and f_cat == f_in
    K, _, f1 = params["w1"].shape
    _, c_in2, f2 = params["w2"].shape
    assert c_in2 == f1 + f_in

    cdt = compute_dtype
    lap_c = lap.astype(cdt)

    # Healpix unpool (nearest x`unpool_factor` up-sample along vertices), fused
    # into the batch->lane stacking transpose on the host: pure layout plumbing,
    # O(V*B*Fin) bytes — negligible vs. the [V,V] Laplacian traffic, and it
    # removes the previous in-kernel [V, Vc] selection matmul entirely.
    # TODO(synk): if the real pooling module is an index-based MaxUnpool (stored
    # argmax indices) rather than nearest upsampling, this needs a scatter.
    x_up = jnp.repeat(x, unpool_factor, axis=1)             # [B, V, Fin]
    xs = _stack_batch(x_up).astype(cdt)                     # [V, B*Fin]
    cds = _stack_batch(concat_data).astype(cdt)             # [V, B*Fin]

    w1b = _fused_cheb_weight(params["w1"], B, (f_in,)).astype(cdt)
    w2b = _fused_cheb_weight(params["w2"], B, (f1, f_in)).astype(cdt)
    # ChebConv biases (params["b1"]/["b2"]) are per-channel constants added
    # before training-mode BatchNorm: they cancel exactly and are never loaded.
    g1 = params["gamma1"].reshape(1, f1).astype(jnp.float32)
    be1 = params["beta1"].reshape(1, f1).astype(jnp.float32)
    g2 = params["gamma2"].reshape(1, f2).astype(jnp.float32)
    be2 = params["beta2"].reshape(1, f2).astype(jnp.float32)

    kernel = functools.partial(
        _fused_decoder_kernel, kernel_size=K, batch=B, f1=f1, f2=f2, eps=eps,
        compute_dtype=cdt)

    operands = (lap_c, xs, cds, w1b, g1, be1, w2b, g2, be2)

    if vmem_limit_bytes is None:
        op_bytes = sum(int(a.size) * a.dtype.itemsize for a in operands)
        # Rough allowance: a handful of [V, B*C] f32 slabs live at once
        # (recursion carries, y, centered d) per stage.
        act_bytes = 8 * V * B * max(f1 + f_in, f2) * 4
        vmem_limit_bytes = int(min(100 * 2 ** 20,
                                   max(32 * 2 ** 20,
                                       2 * (op_bytes + act_bytes))))

    out_s = pl.pallas_call(
        kernel,
        out_shape=jax.ShapeDtypeStruct((V, B * f2), jnp.float32),
        grid=(1,),
        in_specs=[_full_spec(a) for a in operands],
        out_specs=pl.BlockSpec((V, B * f2), lambda i: (0, 0)),
        compiler_params=pltpu.CompilerParams(
            dimension_semantics=("arbitrary",),
            vmem_limit_bytes=vmem_limit_bytes),
    )(*operands)

    return _unstack_batch(out_s, B)   # [B, V, C_out] float32


# ---------------------------------------------------------------------------
# Pure-JAX reference (same math, no Pallas) for a correctness check.
# ---------------------------------------------------------------------------
def _cheb_conv_ref(lap, x, weight, bias):
    K = weight.shape[0]
    x0 = x
    acc = jnp.einsum("bvf,fo->bvo", x0, weight[0])
    if K > 1:
        x1 = jnp.einsum("uv,bvf->buf", lap, x0)
        acc += jnp.einsum("bvf,fo->bvo", x1, weight[1])
        for k in range(2, K):
            x2 = 2.0 * jnp.einsum("uv,bvf->buf", lap, x1) - x0
            acc += jnp.einsum("bvf,fo->bvo", x2, weight[k])
            x0, x1 = x1, x2
    return acc + bias


def _bn_relu_ref(x, gamma, beta, eps=1e-5):
    mean = jnp.mean(x, axis=(0, 1))
    var = jnp.mean((x - mean) ** 2, axis=(0, 1))
    y = (x - mean) / jnp.sqrt(var + eps) * gamma + beta
    return jnp.maximum(y, 0.0)


def _forward_ref(x, concat_data, lap, params, unpool_factor=4):
    x = jnp.repeat(x, unpool_factor, axis=1)
    x = _bn_relu_ref(_cheb_conv_ref(lap, x, params["w1"], params["b1"]),
                     params["gamma1"], params["beta1"])
    x = jnp.concatenate([x, concat_data], axis=2)
    x = _bn_relu_ref(_cheb_conv_ref(lap, x, params["w2"], params["b2"]),
                     params["gamma2"], params["beta2"])
    return x


if __name__ == "__main__":
    # Small, module-consistent shapes.
    B = 2
    V_in = 16                 # coarse vertices entering the decoder block
    unpool = 4                # Healpix unpooling factor
    V = V_in * unpool         # fine vertices (= vertices of concat_data & lap)
    in_ch, out_ch, K = 8, 16, 3

    key = jax.random.PRNGKey(0)
    k_x, k_c, k_l, k_w1, k_w2 = jax.random.split(key, 5)

    x = jax.random.normal(k_x, (B, V_in, in_ch), dtype=jnp.float32)
    concat_data = jax.random.normal(k_c, (B, V, in_ch), dtype=jnp.float32)

    # Synthetic symmetric (dense) Laplacian for the fine resolution.
    a = jax.random.normal(k_l, (V, V), dtype=jnp.float32)
    lap = (a + a.T) / (2.0 * jnp.sqrt(jnp.float32(V)))

    # Deterministic parameter init (mirrors ChebConv's kaiming-style init:
    # std = sqrt(2 / (in_channels * kernel_size)), bias = 0.01; BN affine 1/0).
    std1 = (2.0 / (in_ch * K)) ** 0.5
    std2 = (2.0 / ((in_ch + out_ch) * K)) ** 0.5
    params = {
        "w1": std1 * jax.random.normal(k_w1, (K, in_ch, out_ch), dtype=jnp.float32),
        "b1": jnp.full((out_ch,), 0.01, dtype=jnp.float32),
        "gamma1": jnp.ones((out_ch,), dtype=jnp.float32),
        "beta1": jnp.zeros((out_ch,), dtype=jnp.float32),
        "w2": std2 * jax.random.normal(k_w2, (K, in_ch + out_ch, out_ch), dtype=jnp.float32),
        "b2": jnp.full((out_ch,), 0.01, dtype=jnp.float32),
        "gamma2": jnp.ones((out_ch,), dtype=jnp.float32),
        "beta2": jnp.zeros((out_ch,), dtype=jnp.float32),
    }

    ref = _forward_ref(x, concat_data, lap, params, unpool)

    # Default path: bf16 MXU operands / f32 accumulation (looser check).
    out_bf16 = spherical_cheb_bn_pool_concat(x, concat_data, lap, params, unpool)
    out_bf16 = jax.block_until_ready(out_bf16)
    assert out_bf16.shape == (B, V, out_ch), out_bf16.shape
    err_bf16 = float(jnp.max(jnp.abs(out_bf16 - ref)))
    assert jnp.allclose(out_bf16, ref, atol=1e-1, rtol=1e-1), err_bf16

    # f32 path (tight check).
    out_f32 = spherical_cheb_bn_pool_concat(
        x, concat_data, lap, params, unpool, compute_dtype=jnp.float32)
    out_f32 = jax.block_until_ready(out_f32)
    err_f32 = float(jnp.max(jnp.abs(out_f32 - ref)))
    assert jnp.allclose(out_f32, ref, atol=2e-3, rtol=2e-3), err_f32

    print("KERNEL_OK")
</pallas_src>

<mosaic_0001>
module attributes {stable_mosaic.version = 11 : i64} {
  func.func @_fused_decoder_kernel(%arg0: i32, %arg1: memref<64x64xbf16, #tpu.memory_space<vmem>>, %arg2: memref<64x16xbf16, #tpu.memory_space<vmem>>, %arg3: memref<64x16xbf16, #tpu.memory_space<vmem>>, %arg4: memref<3x16x32xbf16, #tpu.memory_space<vmem>>, %arg5: memref<1x16xf32, #tpu.memory_space<vmem>>, %arg6: memref<1x16xf32, #tpu.memory_space<vmem>>, %arg7: memref<3x48x32xbf16, #tpu.memory_space<vmem>>, %arg8: memref<1x16xf32, #tpu.memory_space<vmem>>, %arg9: memref<1x16xf32, #tpu.memory_space<vmem>>, %arg10: memref<64x32xf32, #tpu.memory_space<vmem>>) attributes {dimension_semantics = [#tpu.dimension_semantics<arbitrary>], iteration_bounds = array<i64: 1>, scalar_prefetch = 0 : i64, scratch_operands = 0 : i64, tpu.core_type = #tpu.core_type<tc>, window_params = [{pipeline_mode = #tpu.pipeline_mode<synchronous>, transform_indices = @transform_0, window_bounds = array<i64: 64, 64>}, {pipeline_mode = #tpu.pipeline_mode<synchronous>, transform_indices = @transform_1, window_bounds = array<i64: 64, 16>}, {pipeline_mode = #tpu.pipeline_mode<synchronous>, transform_indices = @transform_2, window_bounds = array<i64: 64, 16>}, {pipeline_mode = #tpu.pipeline_mode<synchronous>, transform_indices = @transform_3, window_bounds = array<i64: 3, 16, 32>}, {pipeline_mode = #tpu.pipeline_mode<synchronous>, transform_indices = @transform_4, window_bounds = array<i64: 1, 16>}, {pipeline_mode = #tpu.pipeline_mode<synchronous>, transform_indices = @transform_5, window_bounds = array<i64: 1, 16>}, {pipeline_mode = #tpu.pipeline_mode<synchronous>, transform_indices = @transform_6, window_bounds = array<i64: 3, 48, 32>}, {pipeline_mode = #tpu.pipeline_mode<synchronous>, transform_indices = @transform_7, window_bounds = array<i64: 1, 16>}, {pipeline_mode = #tpu.pipeline_mode<synchronous>, transform_indices = @transform_8, window_bounds = array<i64: 1, 16>}, {pipeline_mode = #tpu.pipeline_mode<synchronous>, transform_indices = @transform_9, window_bounds = array<i64: 64, 32>}]} {
    %c0 = arith.constant 0 : index
    %c0_0 = arith.constant 0 : index
    %0 = vector.load %arg1[%c0, %c0_0] : memref<64x64xbf16, #tpu.memory_space<vmem>>, vector<64x64xbf16>
    %c0_1 = arith.constant 0 : index
    %c0_2 = arith.constant 0 : index
    %1 = vector.load %arg2[%c0_1, %c0_2] : memref<64x16xbf16, #tpu.memory_space<vmem>>, vector<64x16xbf16>
    %c0_3 = arith.constant 0 : index
    %c0_4 = arith.constant 0 : index
    %c0_5 = arith.constant 0 : index
    %2 = vector.load %arg4[%c0_3, %c0_4, %c0_5] : memref<3x16x32xbf16, #tpu.memory_space<vmem>>, vector<1x16x32xbf16>
    %3 = vector.shape_cast %2 : vector<1x16x32xbf16> to vector<16x32xbf16>
    %cst = arith.constant dense<0.000000e+00> : vector<64x32xf32>
    %4 = tpu.matmul %1, %3, %cst {dimension_numbers = #tpu.dot_dimension_numbers<[1], [0], [0], [1], [0, 0, 1, 1], [], []>} : vector<64x16xbf16>, vector<16x32xbf16>, vector<64x32xf32> -> vector<64x32xf32>
    %cst_6 = arith.constant dense<0.000000e+00> : vector<64x16xf32>
    %5 = tpu.matmul %0, %1, %cst_6 {dimension_numbers = #tpu.dot_dimension_numbers<[1], [0], [0], [1], [0, 0, 1, 1], [], []>} : vector<64x64xbf16>, vector<64x16xbf16>, vector<64x16xf32> -> vector<64x16xf32>
    %6 = arith.truncf %5 : vector<64x16xf32> to vector<64x16xbf16>
    %c1 = arith.constant 1 : index
    %c0_7 = arith.constant 0 : index
    %c0_8 = arith.constant 0 : index
    %7 = vector.load %arg4[%c1, %c0_7, %c0_8] : memref<3x16x32xbf16, #tpu.memory_space<vmem>>, vector<1x16x32xbf16>
    %8 = vector.shape_cast %7 : vector<1x16x32xbf16> to vector<16x32xbf16>
    %cst_9 = arith.constant dense<0.000000e+00> : vector<64x32xf32>
    %9 = tpu.matmul %6, %8, %cst_9 {dimension_numbers = #tpu.dot_dimension_numbers<[1], [0], [0], [1], [0, 0, 1, 1], [], []>} : vector<64x16xbf16>, vector<16x32xbf16>, vector<64x32xf32> -> vector<64x32xf32>
    %10 = arith.addf %4, %9 : vector<64x32xf32>
    %cst_10 = arith.constant dense<0.000000e+00> : vector<64x16xf32>
    %11 = tpu.matmul %0, %6, %cst_10 {dimension_numbers = #tpu.dot_dimension_numbers<[1], [0], [0], [1], [0, 0, 1, 1], [], []>} : vector<64x64xbf16>, vector<64x16xbf16>, vector<64x16xf32> -> vector<64x16xf32>
    %cst_11 = arith.constant 2.000000e+00 : f32
    %12 = vector.broadcast %cst_11 : f32 to vector<64x16xf32>
    %13 = arith.mulf %12, %11 : vector<64x16xf32>
    %14 = arith.extf %1 : vector<64x16xbf16> to vector<64x16xf32>
    %15 = arith.subf %13, %14 : vector<64x16xf32>
    %16 = arith.truncf %15 : vector<64x16xf32> to vector<64x16xbf16>
    %c2 = arith.constant 2 : index
    %c0_12 = arith.constant 0 : index
    %c0_13 = arith.constant 0 : index
    %17 = vector.load %arg4[%c2, %c0_12, %c0_13] : memref<3x16x32xbf16, #tpu.memory_space<vmem>>, vector<1x16x32xbf16>
    %18 = vector.shape_cast %17 : vector<1x16x32xbf16> to vector<16x32xbf16>
    %cst_14 = arith.constant dense<0.000000e+00> : vector<64x32xf32>
    %19 = tpu.matmul %16, %18, %cst_14 {dimension_numbers = #tpu.dot_dimension_numbers<[1], [0], [0], [1], [0, 0, 1, 1], [], []>} : vector<64x16xbf16>, vector<16x32xbf16>, vector<64x32xf32> -> vector<64x32xf32>
    %20 = arith.addf %10, %19 : vector<64x32xf32>
    %cst_15 = arith.constant dense<0.000000e+00> : vector<32xf32>
    %21 = vector.multi_reduction <add>, %20, %cst_15 [0] : vector<64x32xf32> to vector<32xf32>
    %22 = vector.shape_cast %21 : vector<32xf32> to vector<1x32xf32>
    %23 = vector.extract_strided_slice %22 {offsets = [0, 0], sizes = [1, 16], strides = [1, 1]} : vector<1x32xf32> to vector<1x16xf32>
    %24 = vector.extract_strided_slice %22 {offsets = [0, 16], sizes = [1, 16], strides = [1, 1]} : vector<1x32xf32> to vector<1x16xf32>
    %25 = arith.addf %23, %24 : vector<1x16xf32>
    %cst_16 = arith.constant 7.812500e-03 : f32
    %26 = vector.broadcast %cst_16 : f32 to vector<1x16xf32>
    %27 = arith.mulf %25, %26 : vector<1x16xf32>
    %28 = tpu.concatenate %27, %27 in 1 : vector<1x16xf32>, vector<1x16xf32> -> vector<1x32xf32>
    %29 = vector.broadcast %28 : vector<1x32xf32> to vector<64x32xf32>
    %30 = arith.subf %20, %29 : vector<64x32xf32>
    %31 = arith.mulf %30, %30 : vector<64x32xf32>
    %cst_17 = arith.constant dense<0.000000e+00> : vector<32xf32>
    %32 = vector.multi_reduction <add>, %31, %cst_17 [0] : vector<64x32xf32> to vector<32xf32>
    %33 = vector.shape_cast %32 : vector<32xf32> to vector<1x32xf32>
    %34 = vector.extract_strided_slice %33 {offsets = [0, 0], sizes = [1, 16], strides = [1, 1]} : vector<1x32xf32> to vector<1x16xf32>
    %35 = vector.extract_strided_slice %33 {offsets = [0, 16], sizes = [1, 16], strides = [1, 1]} : vector<1x32xf32> to vector<1x16xf32>
    %36 = arith.addf %34, %35 : vector<1x16xf32>
    %cst_18 = arith.constant 7.812500e-03 : f32
    %37 = vector.broadcast %cst_18 : f32 to vector<1x16xf32>
    %38 = arith.mulf %36, %37 : vector<1x16xf32>
    %c0_19 = arith.constant 0 : index
    %c0_20 = arith.constant 0 : index
    %39 = vector.load %arg5[%c0_19, %c0_20] : memref<1x16xf32, #tpu.memory_space<vmem>>, vector<1x16xf32>
    %cst_21 = arith.constant 9.99999974E-6 : f32
    %40 = vector.broadcast %cst_21 : f32 to vector<1x16xf32>
    %41 = arith.addf %38, %40 : vector<1x16xf32>
    %42 = math.rsqrt %41 : vector<1x16xf32>
    %43 = arith.mulf %39, %42 : vector<1x16xf32>
    %44 = tpu.concatenate %43, %43 in 1 : vector<1x16xf32>, vector<1x16xf32> -> vector<1x32xf32>
    %45 = vector.broadcast %44 : vector<1x32xf32> to vector<64x32xf32>
    %46 = arith.mulf %30, %45 : vector<64x32xf32>
    %c0_22 = arith.constant 0 : index
    %c0_23 = arith.constant 0 : index
    %47 = vector.load %arg6[%c0_22, %c0_23] : memref<1x16xf32, #tpu.memory_space<vmem>>, vector<1x16xf32>
    %48 = tpu.concatenate %47, %47 in 1 : vector<1x16xf32>, vector<1x16xf32> -> vector<1x32xf32>
    %49 = vector.broadcast %48 : vector<1x32xf32> to vector<64x32xf32>
    %50 = arith.addf %46, %49 : vector<64x32xf32>
    %cst_24 = arith.constant 0.000000e+00 : f32
    %51 = vector.broadcast %cst_24 : f32 to vector<64x32xf32>
    %52 = arith.maximumf %50, %51 : vector<64x32xf32>
    %53 = arith.truncf %52 : vector<64x32xf32> to vector<64x32xbf16>
    %c0_25 = arith.constant 0 : index
    %c0_26 = arith.constant 0 : index
    %54 = vector.load %arg3[%c0_25, %c0_26] : memref<64x16xbf16, #tpu.memory_space<vmem>>, vector<64x16xbf16>
    %55 = tpu.concatenate %53, %54 in 1 : vector<64x32xbf16>, vector<64x16xbf16> -> vector<64x48xbf16>
    %c0_27 = arith.constant 0 : index
    %c0_28 = arith.constant 0 : index
    %c0_29 = arith.constant 0 : index
    %56 = vector.load %arg7[%c0_27, %c0_28, %c0_29] : memref<3x48x32xbf16, #tpu.memory_space<vmem>>, vector<1x48x32xbf16>
    %57 = vector.shape_cast %56 : vector<1x48x32xbf16> to vector<48x32xbf16>
    %cst_30 = arith.constant dense<0.000000e+00> : vector<64x32xf32>
    %58 = tpu.matmul %55, %57, %cst_30 {dimension_numbers = #tpu.dot_dimension_numbers<[1], [0], [0], [1], [0, 0, 1, 1], [], []>} : vector<64x48xbf16>, vector<48x32xbf16>, vector<64x32xf32> -> vector<64x32xf32>
    %cst_31 = arith.constant dense<0.000000e+00> : vector<64x48xf32>
    %59 = tpu.matmul %0, %55, %cst_31 {dimension_numbers = #tpu.dot_dimension_numbers<[1], [0], [0], [1], [0, 0, 1, 1], [], []>} : vector<64x64xbf16>, vector<64x48xbf16>, vector<64x48xf32> -> vector<64x48xf32>
    %60 = arith.truncf %59 : vector<64x48xf32> to vector<64x48xbf16>
    %c1_32 = arith.constant 1 : index
    %c0_33 = arith.constant 0 : index
    %c0_34 = arith.constant 0 : index
    %61 = vector.load %arg7[%c1_32, %c0_33, %c0_34] : memref<3x48x32xbf16, #tpu.memory_space<vmem>>, vector<1x48x32xbf16>
    %62 = vector.shape_cast %61 : vector<1x48x32xbf16> to vector<48x32xbf16>
    %cst_35 = arith.constant dense<0.000000e+00> : vector<64x32xf32>
    %63 = tpu.matmul %60, %62, %cst_35 {dimension_numbers = #tpu.dot_dimension_numbers<[1], [0], [0], [1], [0, 0, 1, 1], [], []>} : vector<64x48xbf16>, vector<48x32xbf16>, vector<64x32xf32> -> vector<64x32xf32>
    %64 = arith.addf %58, %63 : vector<64x32xf32>
    %cst_36 = arith.constant dense<0.000000e+00> : vector<64x48xf32>
    %65 = tpu.matmul %0, %60, %cst_36 {dimension_numbers = #tpu.dot_dimension_numbers<[1], [0], [0], [1], [0, 0, 1, 1], [], []>} : vector<64x64xbf16>, vector<64x48xbf16>, vector<64x48xf32> -> vector<64x48xf32>
    %cst_37 = arith.constant 2.000000e+00 : f32
    %66 = vector.broadcast %cst_37 : f32 to vector<64x48xf32>
    %67 = arith.mulf %66, %65 : vector<64x48xf32>
    %68 = arith.extf %55 : vector<64x48xbf16> to vector<64x48xf32>
    %69 = arith.subf %67, %68 : vector<64x48xf32>
    %70 = arith.truncf %69 : vector<64x48xf32> to vector<64x48xbf16>
    %c2_38 = arith.constant 2 : index
    %c0_39 = arith.constant 0 : index
    %c0_40 = arith.constant 0 : index
    %71 = vector.load %arg7[%c2_38, %c0_39, %c0_40] : memref<3x48x32xbf16, #tpu.memory_space<vmem>>, vector<1x48x32xbf16>
    %72 = vector.shape_cast %71 : vector<1x48x32xbf16> to vector<48x32xbf16>
    %cst_41 = arith.constant dense<0.000000e+00> : vector<64x32xf32>
    %73 = tpu.matmul %70, %72, %cst_41 {dimension_numbers = #tpu.dot_dimension_numbers<[1], [0], [0], [1], [0, 0, 1, 1], [], []>} : vector<64x48xbf16>, vector<48x32xbf16>, vector<64x32xf32> -> vector<64x32xf32>
    %74 = arith.addf %64, %73 : vector<64x32xf32>
    %cst_42 = arith.constant dense<0.000000e+00> : vector<32xf32>
    %75 = vector.multi_reduction <add>, %74, %cst_42 [0] : vector<64x32xf32> to vector<32xf32>
    %76 = vector.shape_cast %75 : vector<32xf32> to vector<1x32xf32>
    %77 = vector.extract_strided_slice %76 {offsets = [0, 0], sizes = [1, 16], strides = [1, 1]} : vector<1x32xf32> to vector<1x16xf32>
    %78 = vector.extract_strided_slice %76 {offsets = [0, 16], sizes = [1, 16], strides = [1, 1]} : vector<1x32xf32> to vector<1x16xf32>
    %79 = arith.addf %77, %78 : vector<1x16xf32>
    %cst_43 = arith.constant 7.812500e-03 : f32
    %80 = vector.broadcast %cst_43 : f32 to vector<1x16xf32>
    %81 = arith.mulf %79, %80 : vector<1x16xf32>
    %82 = tpu.concatenate %81, %81 in 1 : vector<1x16xf32>, vector<1x16xf32> -> vector<1x32xf32>
    %83 = vector.broadcast %82 : vector<1x32xf32> to vector<64x32xf32>
    %84 = arith.subf %74, %83 : vector<64x32xf32>
    %85 = arith.mulf %84, %84 : vector<64x32xf32>
    %cst_44 = arith.constant dense<0.000000e+00> : vector<32xf32>
    %86 = vector.multi_reduction <add>, %85, %cst_44 [0] : vector<64x32xf32> to vector<32xf32>
    %87 = vector.shape_cast %86 : vector<32xf32> to vector<1x32xf32>
    %88 = vector.extract_strided_slice %87 {offsets = [0, 0], sizes = [1, 16], strides = [1, 1]} : vector<1x32xf32> to vector<1x16xf32>
    %89 = vector.extract_strided_slice %87 {offsets = [0, 16], sizes = [1, 16], strides = [1, 1]} : vector<1x32xf32> to vector<1x16xf32>
    %90 = arith.addf %88, %89 : vector<1x16xf32>
    %cst_45 = arith.constant 7.812500e-03 : f32
    %91 = vector.broadcast %cst_45 : f32 to vector<1x16xf32>
    %92 = arith.mulf %90, %91 : vector<1x16xf32>
    %c0_46 = arith.constant 0 : index
    %c0_47 = arith.constant 0 : index
    %93 = vector.load %arg8[%c0_46, %c0_47] : memref<1x16xf32, #tpu.memory_space<vmem>>, vector<1x16xf32>
    %cst_48 = arith.constant 9.99999974E-6 : f32
    %94 = vector.broadcast %cst_48 : f32 to vector<1x16xf32>
    %95 = arith.addf %92, %94 : vector<1x16xf32>
    %96 = math.rsqrt %95 : vector<1x16xf32>
    %97 = arith.mulf %93, %96 : vector<1x16xf32>
    %98 = tpu.concatenate %97, %97 in 1 : vector<1x16xf32>, vector<1x16xf32> -> vector<1x32xf32>
    %99 = vector.broadcast %98 : vector<1x32xf32> to vector<64x32xf32>
    %100 = arith.mulf %84, %99 : vector<64x32xf32>
    %c0_49 = arith.constant 0 : index
    %c0_50 = arith.constant 0 : index
    %101 = vector.load %arg9[%c0_49, %c0_50] : memref<1x16xf32, #tpu.memory_space<vmem>>, vector<1x16xf32>
    %102 = tpu.concatenate %101, %101 in 1 : vector<1x16xf32>, vector<1x16xf32> -> vector<1x32xf32>
    %103 = vector.broadcast %102 : vector<1x32xf32> to vector<64x32xf32>
    %104 = arith.addf %100, %103 : vector<64x32xf32>
    %cst_51 = arith.constant 0.000000e+00 : f32
    %105 = vector.broadcast %cst_51 : f32 to vector<64x32xf32>
    %106 = arith.maximumf %104, %105 : vector<64x32xf32>
    %c0_52 = arith.constant 0 : index
    %c0_53 = arith.constant 0 : index
    %107 = vector.load %arg10[%c0_52, %c0_53] : memref<64x32xf32, #tpu.memory_space<vmem>>, vector<64x32xf32>
    tpu.vector_store %arg10[%c0_52, %c0_53], %106 {strides = array<i32>} : memref<64x32xf32, #tpu.memory_space<vmem>>, vector<64x32xf32>,
    return
  }
  func.func @transform_0(%arg0: i32) -> (i32, i32) {
    %c0_i32 = arith.constant 0 : i32
    %c0_i32_0 = arith.constant 0 : i32
    %c0_i32_1 = arith.constant 0 : i32
    return %c0_i32, %c0_i32_0 : i32, i32
  }
  func.func @transform_1(%arg0: i32) -> (i32, i32) {
    %c0_i32 = arith.constant 0 : i32
    %c0_i32_0 = arith.constant 0 : i32
    %c0_i32_1 = arith.constant 0 : i32
    return %c0_i32, %c0_i32_0 : i32, i32
  }
  func.func @transform_2(%arg0: i32) -> (i32, i32) {
    %c0_i32 = arith.constant 0 : i32
    %c0_i32_0 = arith.constant 0 : i32
    %c0_i32_1 = arith.constant 0 : i32
    return %c0_i32, %c0_i32_0 : i32, i32
  }
  func.func @transform_3(%arg0: i32) -> (i32, i32, i32) {
    %c0_i32 = arith.constant 0 : i32
    %c0_i32_0 = arith.constant 0 : i32
    %c0_i32_1 = arith.constant 0 : i32
    %c0_i32_2 = arith.constant 0 : i32
    return %c0_i32, %c0_i32_0, %c0_i32_1 : i32, i32, i32
  }
  func.func @transform_4(%arg0: i32) -> (i32, i32) {
    %c0_i32 = arith.constant 0 : i32
    %c0_i32_0 = arith.constant 0 : i32
    %c0_i32_1 = arith.constant 0 : i32
    return %c0_i32, %c0_i32_0 : i32, i32
  }
  func.func @transform_5(%arg0: i32) -> (i32, i32) {
    %c0_i32 = arith.constant 0 : i32
    %c0_i32_0 = arith.constant 0 : i32
    %c0_i32_1 = arith.constant 0 : i32
    return %c0_i32, %c0_i32_0 : i32, i32
  }
  func.func @transform_6(%arg0: i32) -> (i32, i32, i32) {
    %c0_i32 = arith.constant 0 : i32
    %c0_i32_0 = arith.constant 0 : i32
    %c0_i32_1 = arith.constant 0 : i32
    %c0_i32_2 = arith.constant 0 : i32
    return %c0_i32, %c0_i32_0, %c0_i32_1 : i32, i32, i32
  }
  func.func @transform_7(%arg0: i32) -> (i32, i32) {
    %c0_i32 = arith.constant 0 : i32
    %c0_i32_0 = arith.constant 0 : i32
    %c0_i32_1 = arith.constant 0 : i32
    return %c0_i32, %c0_i32_0 : i32, i32
  }
  func.func @transform_8(%arg0: i32) -> (i32, i32) {
    %c0_i32 = arith.constant 0 : i32
    %c0_i32_0 = arith.constant 0 : i32
    %c0_i32_1 = arith.constant 0 : i32
    return %c0_i32, %c0_i32_0 : i32, i32
  }
  func.func @transform_9(%arg0: i32) -> (i32, i32) {
    %c0_i32 = arith.constant 0 : i32
    %c0_i32_0 = arith.constant 0 : i32
    %c0_i32_1 = arith.constant 0 : i32
    return %c0_i32, %c0_i32_0 : i32, i32
  }
}

</mosaic_0001>

<llo_original>
// kernel: tpu_custom_call.1
$region0: #{tpu_custom_call.1}
  #allocation0 [shape = 'u32[]', space=smem, size = 0x4, offset = 0x4, fixed_abs, tag = 'smem constant byte address 0x4 - core index']
  #allocation1 [shape = 'u32[144,128]{1,0:T(1,128)}', space=vmem, size = 0x12000, scoped, tag = 'internal scratch']
  %s0 = inlined_call_operand.vmem [shape: bf16[64,64], index: 0, kind: input, shape index: {}]
  %s1 = inlined_call_operand.vmem [shape: bf16[64,16], index: 1, kind: input, shape index: {}]
  %s2 = inlined_call_operand.vmem [shape: bf16[64,16], index: 2, kind: input, shape index: {}]
  %s3 = inlined_call_operand.vmem [shape: bf16[3,16,32], index: 3, kind: input, shape index: {}]
  %s4 = inlined_call_operand.vmem [shape: f32[1,16], index: 4, kind: input, shape index: {}]
  %s5 = inlined_call_operand.vmem [shape: f32[1,16], index: 5, kind: input, shape index: {}]
  %s6 = inlined_call_operand.vmem [shape: bf16[3,48,32], index: 6, kind: input, shape index: {}]
  %s7 = inlined_call_operand.vmem [shape: f32[1,16], index: 7, kind: input, shape index: {}]
  %s8 = inlined_call_operand.vmem [shape: f32[1,16], index: 8, kind: input, shape index: {}]
  %s9 = inlined_call_operand.vmem [shape: f32[64,32], index: 9, kind: output, shape index: {}]
  %s10 = sld [smem:[#allocation0]]
  $region46: #{tpu_custom_call.1} parent=0
    _
  %s12 = ssub.s32 1, %s10
  %s13 = scalar_select 0, %s12, %s10
  // Predicated region
  $region2: #{tpu_custom_call.1} parent=0 // pred_check
    _
  $region3: #{tpu_custom_call.1} parent=0 // pred_check_branch
    %15 = sbr.rel (0) target = $region5
  $region4: #{tpu_custom_call.1} parent=0 // pred_region
    _
  $region5: #{tpu_custom_call.1} parent=0 // pred_fallthru
    _
  // Predicated region
  $region6: #{tpu_custom_call.1} parent=0 // pred_check
    _
  $region7: #{tpu_custom_call.1} parent=0 // pred_check_branch
    %17 = sbr.rel (0) target = $region9
  $region8: #{tpu_custom_call.1} parent=0 // pred_region
    _
  $region9: #{tpu_custom_call.1} parent=0 // pred_fallthru
    _
  // Predicated region
  $region10: #{tpu_custom_call.1} parent=0 // pred_check
    _
  $region11: #{tpu_custom_call.1} parent=0 // pred_check_branch
    %19 = sbr.rel (0) target = $region13
  $region12: #{tpu_custom_call.1} parent=0 // pred_region
    _
  $region13: #{tpu_custom_call.1} parent=0 // pred_fallthru
    _
  // Predicated region
  $region14: #{tpu_custom_call.1} parent=0 // pred_check
    _
  $region15: #{tpu_custom_call.1} parent=0 // pred_check_branch
    %21 = sbr.rel (0) target = $region17
  $region16: #{tpu_custom_call.1} parent=0 // pred_region
    _
  $region17: #{tpu_custom_call.1} parent=0 // pred_fallthru
    _
  // Predicated region
  $region18: #{tpu_custom_call.1} parent=0 // pred_check
    _
  $region19: #{tpu_custom_call.1} parent=0 // pred_check_branch
    %23 = sbr.rel (0) target = $region21
  $region20: #{tpu_custom_call.1} parent=0 // pred_region
    _
  $region21: #{tpu_custom_call.1} parent=0 // pred_fallthru
    _
  // Predicated region
  $region22: #{tpu_custom_call.1} parent=0 // pred_check
    _
  $region23: #{tpu_custom_call.1} parent=0 // pred_check_branch
    %25 = sbr.rel (0) target = $region25
  $region24: #{tpu_custom_call.1} parent=0 // pred_region
    _
  $region25: #{tpu_custom_call.1} parent=0 // pred_fallthru
    _
  // Predicated region
  $region26: #{tpu_custom_call.1} parent=0 // pred_check
    _
  $region27: #{tpu_custom_call.1} parent=0 // pred_check_branch
    %27 = sbr.rel (0) target = $region29
  $region28: #{tpu_custom_call.1} parent=0 // pred_region
    _
  $region29: #{tpu_custom_call.1} parent=0 // pred_fallthru
    _
  // Predicated region
  $region30: #{tpu_custom_call.1} parent=0 // pred_check
    _
  $region31: #{tpu_custom_call.1} parent=0 // pred_check_branch
    %29 = sbr.rel (0) target = $region33
  $region32: #{tpu_custom_call.1} parent=0 // pred_region
    _
  $region33: #{tpu_custom_call.1} parent=0 // pred_fallthru
    _
  // Predicated region
  $region34: #{tpu_custom_call.1} parent=0 // pred_check
    _
  $region35: #{tpu_custom_call.1} parent=0 // pred_check_branch
    %31 = sbr.rel (0) target = $region37
  $region36: #{tpu_custom_call.1} parent=0 // pred_region
    _
  $region37: #{tpu_custom_call.1} parent=0 // pred_fallthru
    _
  %v33 = vld [vmem:[%s0] sm:$0xf]
  %v34 = vld [vmem:[%s0 + $0x4] sm:$0xf]
  %v35 = vld [vmem:[%s0 + $0x8] sm:$0xf]
  %v36 = vld [vmem:[%s0 + $0xc] sm:$0xf]
  %v37 = vld [vmem:[%s0 + $0x10] sm:$0xf]
  %v38 = vld [vmem:[%s0 + $0x14] sm:$0xf]
  %v39 = vld [vmem:[%s0 + $0x18] sm:$0xf]
  %v40 = vld [vmem:[%s0 + $0x1c] sm:$0xf]
  %v41 = vld [vmem:[%s1] sm:$0xf]
  %v42 = vld [vmem:[%s1 + $0x4] sm:$0xf]
  %v43 = vld [vmem:[%s1 + $0x8] sm:$0xf]
  %v44 = vld [vmem:[%s1 + $0xc] sm:$0xf]
  %v45 = vld [vmem:[%s1 + $0x10] sm:$0xf]
  %v46 = vld [vmem:[%s1 + $0x14] sm:$0xf]
  %v47 = vld [vmem:[%s1 + $0x18] sm:$0xf]
  %v48 = vld [vmem:[%s1 + $0x1c] sm:$0xf]
  %v49 = vld [vmem:[%s3] sm:$0xf]
  %v50 = vld [vmem:[%s3 + $0x4] sm:$0xf]
  %v59 = vunpack.c.l.b16 %v33
  %v60 = vunpack.c.l.b16 %v34
  %v61 = vunpack.c.l.b16 %v35
  %v62 = vunpack.c.l.b16 %v36
  %v63 = vunpack.c.l.b16 %v37
  %v64 = vunpack.c.l.b16 %v38
  %v65 = vunpack.c.l.b16 %v39
  %v66 = vunpack.c.l.b16 %v40
  %v67 = vpack.c.b16 %v60, %v59
  %v68 = vpack.c.b16 %v62, %v61
  %v69 = vpack.c.b16 %v64, %v63
  %v70 = vpack.c.b16 %v66, %v65
  %v79 = vunpack.c.l.b16 %v41
  %v80 = vunpack.c.l.b16 %v42
  %v81 = vunpack.c.l.b16 %v43
  %v82 = vunpack.c.l.b16 %v44
  %v83 = vunpack.c.l.b16 %v45
  %v84 = vunpack.c.l.b16 %v46
  %v85 = vunpack.c.l.b16 %v47
  %v86 = vunpack.c.l.b16 %v48
  %v87 = vpack.c.b16 %v80, %v79
  %v88 = vpack.c.b16 %v82, %v81
  %v89 = vpack.c.b16 %v84, %v83
  %v90 = vpack.c.b16 %v86, %v85
  %vm95 = vcmask 523264
  %v97 = vsel %vm95, %v67, 0
  %v100 = vsel %vm95, %v68, 0
  %v103 = vsel %vm95, %v69, 0
  %v106 = vsel %vm95, %v70, 0
  %108 = vmatprep.subr.bf16.mxu0 0
  %109 = vmatpush1.bf16.msra.mxu0 0
  %110 = vmatprep.subr.bf16.mxu0 0
  %111 = vmatpush1.bf16.msra.mxu0 0
  %112 = vmatprep.subr.bf16.mxu0 0
  %113 = vmatpush1.bf16.msra.mxu0 0
  %114 = vmatprep.subr.bf16.mxu0 0
  %115 = vmatpush1.bf16.msra.mxu0 0
  %116 = vmatprep.subr.bf16.mxu0 0
  %117 = vmatpush1.bf16.msra.mxu0 %v90
  %118 = vmatprep.subr.bf16.mxu0 0
  %119 = vmatpush1.bf16.msra.mxu0 %v89
  %120 = vmatprep.subr.bf16.mxu0 0
  %121 = vmatpush1.bf16.msra.mxu0 %v88
  %122 = vmatprep.subr.bf16.mxu0 0
  %123 = vmatpush1.bf16.msra.mxu0 %v87
  %124 = vmatprep.subr.bf16.mxu0 0
  %125 = vmatpush2.bf16.msra.mxu0 0
  %126 = vmatprep.subr.bf16.mxu0 0
  %127 = vmatpush2.bf16.msra.mxu0 0
  %128 = vmatprep.subr.bf16.mxu0 0
  %129 = vmatpush2.bf16.msra.mxu0 0
  %130 = vmatprep.subr.bf16.mxu0 0
  %131 = vmatpush2.bf16.msra.mxu0 0
  %132 = vmatprep.subr.bf16.mxu0 0
  %133 = vmatpush2.bf16.msra.mxu0 0
  %134 = vmatprep.subr.bf16.mxu0 0
  %135 = vmatpush2.bf16.msra.mxu0 0
  %136 = vmatprep.subr.bf16.mxu0 0
  %137 = vmatpush2.bf16.msra.mxu0 0
  %138 = vmatprep.subr.bf16.mxu0 0
  %139 = vmatpush2.bf16.msra.mxu0 0
  %140 = vmatprep.mubr.bf16.mxu0 0
  %141 = vmatmul.mubr.bf16.gmra.mxu0 %v97
  %v142 = vpop.f32.mrf.mxu0
  %v143 = vadd.f32 0.0, %v142
  %v144 = vpop.f32.mrf.mxu0
  %v145 = vpop.f32.mrf.mxu0
  %v146 = vadd.f32 0.0, %v145
  %v147 = vpop.f32.mrf.mxu0
  %148 = vmatprep.mubr.bf16.mxu0 0
  %149 = vmatmul.mubr.bf16.gmra.mxu0 %v100
  %v150 = vpop.f32.mrf.mxu0
  %v151 = vadd.f32 0.0, %v150
  %v152 = vpop.f32.mrf.mxu0
  %v153 = vpop.f32.mrf.mxu0
  %v154 = vadd.f32 0.0, %v153
  %v155 = vpop.f32.mrf.mxu0
  %156 = vmatprep.mubr.bf16.mxu0 0
  %157 = vmatmul.mubr.bf16.gmra.mxu0 %v103
  %v158 = vpop.f32.mrf.mxu0
  %v159 = vadd.f32 0.0, %v158
  %v160 = vpop.f32.mrf.mxu0
  %v161 = vpop.f32.mrf.mxu0
  %v162 = vadd.f32 0.0, %v161
  %v163 = vpop.f32.mrf.mxu0
  %164 = vmatprep.mubr.bf16.mxu0 0
  %165 = vmatmul.mubr.bf16.gmra.mxu0 %v106
  %v166 = vpop.f32.mrf.mxu0
  %v167 = vadd.f32 0.0, %v166
  %v168 = vpop.f32.mrf.mxu0
  %v169 = vpop.f32.mrf.mxu0
  %v170 = vadd.f32 0.0, %v169
  %v171 = vpop.f32.mrf.mxu0
  %172 = vdwg.mxu0
  %v173 = vpack.c.bf16 %v146, %v143
  %v174 = vpack.c.bf16 %v154, %v151
  %v175 = vpack.c.bf16 %v162, %v159
  %v176 = vpack.c.bf16 %v170, %v167
  %s177 = scalar_lea.vmem %s3, 8
  %v178 = vld [vmem:[%s177] sm:$0xf]
  %v179 = vld [vmem:[%s177 + $0x4] sm:$0xf]
  %v182 = vunpack.c.l.b16 %v178
  %v183 = vunpack.c.l.b16 %v179
  %v184 = vpack.c.b16 %v183, %v182
  %vm186 = vcmask 130048
  %v188 = vsel %vm186, %v173, 0
  %v191 = vsel %vm186, %v174, 0
  %v194 = vsel %vm186, %v175, 0
  %v197 = vsel %vm186, %v176, 0
  %199 = vmatprep.subr.bf16.mxu0 0
  %200 = vmatpush1.bf16.msra.mxu0 0
  %201 = vmatprep.subr.bf16.mxu0 0
  %202 = vmatpush1.bf16.msra.mxu0 0
  %203 = vmatprep.subr.bf16.mxu0 0
  %204 = vmatpush1.bf16.msra.mxu0 0
  %205 = vmatprep.subr.bf16.mxu0 0
  %206 = vmatpush1.bf16.msra.mxu0 0
  %207 = vmatprep.subr.bf16.mxu0 0
  %208 = vmatpush1.bf16.msra.mxu0 0
  %209 = vmatprep.subr.bf16.mxu0 0
  %210 = vmatpush1.bf16.msra.mxu0 0
  %211 = vmatprep.subr.bf16.mxu0 0
  %212 = vmatpush1.bf16.msra.mxu0 0
  %213 = vmatprep.subr.bf16.mxu0 0
  %214 = vmatpush1.bf16.msra.mxu0 %v184
  %215 = vmatprep.subr.bf16.mxu0 0
  %216 = vmatpush2.bf16.msra.mxu0 0
  %217 = vmatprep.subr.bf16.mxu0 0
  %218 = vmatpush2.bf16.msra.mxu0 0
  %219 = vmatprep.subr.bf16.mxu0 0
  %220 = vmatpush2.bf16.msra.mxu0 0
  %221 = vmatprep.subr.bf16.mxu0 0
  %222 = vmatpush2.bf16.msra.mxu0 0
  %223 = vmatprep.subr.bf16.mxu0 0
  %224 = vmatpush2.bf16.msra.mxu0 0
  %225 = vmatprep.subr.bf16.mxu0 0
  %226 = vmatpush2.bf16.msra.mxu0 0
  %227 = vmatprep.subr.bf16.mxu0 0
  %228 = vmatpush2.bf16.msra.mxu0 0
  %229 = vmatprep.subr.bf16.mxu0 0
  %230 = vmatpush2.bf16.msra.mxu0 0
  %231 = vmatprep.mubr.bf16.mxu0 0
  %232 = vmatmul.mubr.bf16.gmra.mxu0 %v188
  %v233 = vpop.f32.mrf.mxu0
  %v234 = vadd.f32 0.0, %v233
  %v235 = vpop.f32.mrf.mxu0
  %v236 = vpop.f32.mrf.mxu0
  %v237 = vadd.f32 0.0, %v236
  %v238 = vpop.f32.mrf.mxu0
  %239 = vmatprep.mubr.bf16.mxu0 0
  %240 = vmatmul.mubr.bf16.gmra.mxu0 %v191
  %v241 = vpop.f32.mrf.mxu0
  %v242 = vadd.f32 0.0, %v241
  %v243 = vpop.f32.mrf.mxu0
  %v244 = vpop.f32.mrf.mxu0
  %v245 = vadd.f32 0.0, %v244
  %v246 = vpop.f32.mrf.mxu0
  %247 = vmatprep.mubr.bf16.mxu0 0
  %248 = vmatmul.mubr.bf16.gmra.mxu0 %v194
  %v249 = vpop.f32.mrf.mxu0
  %v250 = vadd.f32 0.0, %v249
  %v251 = vpop.f32.mrf.mxu0
  %v252 = vpop.f32.mrf.mxu0
  %v253 = vadd.f32 0.0, %v252
  %v254 = vpop.f32.mrf.mxu0
  %255 = vmatprep.mubr.bf16.mxu0 0
  %256 = vmatmul.mubr.bf16.gmra.mxu0 %v197
  %v257 = vpop.f32.mrf.mxu0
  %v258 = vadd.f32 0.0, %v257
  %v259 = vpop.f32.mrf.mxu0
  %v260 = vpop.f32.mrf.mxu0
  %v261 = vadd.f32 0.0, %v260
  %v262 = vpop.f32.mrf.mxu0
  %263 = vdwg.mxu0
  %v266 = vunpack.c.l.b16 %v49
  %v267 = vunpack.c.l.b16 %v50
  %v268 = vpack.c.b16 %v267, %v266
  %v271 = vsel %vm186, %v87, 0
  %v274 = vsel %vm186, %v88, 0
  %v277 = vsel %vm186, %v89, 0
  %v280 = vsel %vm186, %v90, 0
  %282 = vmatprep.subr.bf16.mxu0 0
  %283 = vmatpush1.bf16.msra.mxu0 0
  %284 = vmatprep.subr.bf16.mxu0 0
  %285 = vmatpush1.bf16.msra.mxu0 0
  %286 = vmatprep.subr.bf16.mxu0 0
  %287 = vmatpush1.bf16.msra.mxu0 0
  %288 = vmatprep.subr.bf16.mxu0 0
  %289 = vmatpush1.bf16.msra.mxu0 0
  %290 = vmatprep.subr.bf16.mxu0 0
  %291 = vmatpush1.bf16.msra.mxu0 0
  %292 = vmatprep.subr.bf16.mxu0 0
  %293 = vmatpush1.bf16.msra.mxu0 0
  %294 = vmatprep.subr.bf16.mxu0 0
  %295 = vmatpush1.bf16.msra.mxu0 0
  %296 = vmatprep.subr.bf16.mxu0 0
  %297 = vmatpush1.bf16.msra.mxu0 %v268
  %298 = vmatprep.subr.bf16.mxu0 0
  %299 = vmatpush2.bf16.msra.mxu0 0
  %300 = vmatprep.subr.bf16.mxu0 0
  %301 = vmatpush2.bf16.msra.mxu0 0
  %302 = vmatprep.subr.bf16.mxu0 0
  %303 = vmatpush2.bf16.msra.mxu0 0
  %304 = vmatprep.subr.bf16.mxu0 0
  %305 = vmatpush2.bf16.msra.mxu0 0
  %306 = vmatprep.subr.bf16.mxu0 0
  %307 = vmatpush2.bf16.msra.mxu0 0
  %308 = vmatprep.subr.bf16.mxu0 0
  %309 = vmatpush2.bf16.msra.mxu0 0
  %310 = vmatprep.subr.bf16.mxu0 0
  %311 = vmatpush2.bf16.msra.mxu0 0
  %312 = vmatprep.subr.bf16.mxu0 0
  %313 = vmatpush2.bf16.msra.mxu0 0
  %314 = vmatprep.mubr.bf16.mxu0 0
  %315 = vmatmul.mubr.bf16.gmra.mxu0 %v271
  %v316 = vpop.f32.mrf.mxu0
  %v317 = vadd.f32 %v234, %v316
  %v318 = vpop.f32.mrf.mxu0
  %v319 = vpop.f32.mrf.mxu0
  %v320 = vadd.f32 %v237, %v319
  %v321 = vpop.f32.mrf.mxu0
  %322 = vmatprep.mubr.bf16.mxu0 0
  %323 = vmatmul.mubr.bf16.gmra.mxu0 %v274
  %v324 = vpop.f32.mrf.mxu0
  %v325 = vadd.f32 %v242, %v324
  %v326 = vpop.f32.mrf.mxu0
  %v327 = vpop.f32.mrf.mxu0
  %v328 = vadd.f32 %v245, %v327
  %v329 = vpop.f32.mrf.mxu0
  %330 = vmatprep.mubr.bf16.mxu0 0
  %331 = vmatmul.mubr.bf16.gmra.mxu0 %v277
  %v332 = vpop.f32.mrf.mxu0
  %v333 = vadd.f32 %v250, %v332
  %v334 = vpop.f32.mrf.mxu0
  %v335 = vpop.f32.mrf.mxu0
  %v336 = vadd.f32 %v253, %v335
  %v337 = vpop.f32.mrf.mxu0
  %338 = vmatprep.mubr.bf16.mxu0 0
  %339 = vmatmul.mubr.bf16.gmra.mxu0 %v280
  %v340 = vpop.f32.mrf.mxu0
  %v341 = vadd.f32 %v258, %v340
  %v342 = vpop.f32.mrf.mxu0
  %v343 = vpop.f32.mrf.mxu0
  %v344 = vadd.f32 %v261, %v343
  %v345 = vpop.f32.mrf.mxu0
  %346 = vdwg.mxu0
  %347 = vmatprep.subr.bf16.mxu0 0
  %348 = vmatpush1.bf16.msra.mxu0 0
  %349 = vmatprep.subr.bf16.mxu0 0
  %350 = vmatpush1.bf16.msra.mxu0 0
  %351 = vmatprep.subr.bf16.mxu0 0
  %352 = vmatpush1.bf16.msra.mxu0 0
  %353 = vmatprep.subr.bf16.mxu0 0
  %354 = vmatpush1.bf16.msra.mxu0 0
  %355 = vmatprep.subr.bf16.mxu0 0
  %356 = vmatpush1.bf16.msra.mxu0 %v176
  %357 = vmatprep.subr.bf16.mxu0 0
  %358 = vmatpush1.bf16.msra.mxu0 %v175
  %359 = vmatprep.subr.bf16.mxu0 0
  %360 = vmatpush1.bf16.msra.mxu0 %v174
  %361 = vmatprep.subr.bf16.mxu0 0
  %362 = vmatpush1.bf16.msra.mxu0 %v173
  %363 = vmatprep.subr.bf16.mxu0 0
  %364 = vmatpush2.bf16.msra.mxu0 0
  %365 = vmatprep.subr.bf16.mxu0 0
  %366 = vmatpush2.bf16.msra.mxu0 0
  %367 = vmatprep.subr.bf16.mxu0 0
  %368 = vmatpush2.bf16.msra.mxu0 0
  %369 = vmatprep.subr.bf16.mxu0 0
  %370 = vmatpush2.bf16.msra.mxu0 0
  %371 = vmatprep.subr.bf16.mxu0 0
  %372 = vmatpush2.bf16.msra.mxu0 0
  %373 = vmatprep.subr.bf16.mxu0 0
  %374 = vmatpush2.bf16.msra.mxu0 0
  %375 = vmatprep.subr.bf16.mxu0 0
  %376 = vmatpush2.bf16.msra.mxu0 0
  %377 = vmatprep.subr.bf16.mxu0 0
  %378 = vmatpush2.bf16.msra.mxu0 0
  %379 = vmatprep.mubr.bf16.mxu0 0
  %380 = vmatmul.mubr.bf16.gmra.mxu0 %v97
  %v381 = vpop.f32.mrf.mxu0
  %v382 = vadd.f32 0.0, %v381
  %v383 = vpop.f32.mrf.mxu0
  %v384 = vpop.f32.mrf.mxu0
  %v385 = vadd.f32 0.0, %v384
  %v386 = vpop.f32.mrf.mxu0
  %387 = vmatprep.mubr.bf16.mxu0 0
  %388 = vmatmul.mubr.bf16.gmra.mxu0 %v100
  %v389 = vpop.f32.mrf.mxu0
  %v390 = vadd.f32 0.0, %v389
  %v391 = vpop.f32.mrf.mxu0
  %v392 = vpop.f32.mrf.mxu0
  %v393 = vadd.f32 0.0, %v392
  %v394 = vpop.f32.mrf.mxu0
  %395 = vmatprep.mubr.bf16.mxu0 0
  %396 = vmatmul.mubr.bf16.gmra.mxu0 %v103
  %v397 = vpop.f32.mrf.mxu0
  %v398 = vadd.f32 0.0, %v397
  %v399 = vpop.f32.mrf.mxu0
  %v400 = vpop.f32.mrf.mxu0
  %v401 = vadd.f32 0.0, %v400
  %v402 = vpop.f32.mrf.mxu0
  %403 = vmatprep.mubr.bf16.mxu0 0
  %404 = vmatmul.mubr.bf16.gmra.mxu0 %v106
  %v405 = vpop.f32.mrf.mxu0
  %v406 = vadd.f32 0.0, %v405
  %v407 = vpop.f32.mrf.mxu0
  %v408 = vpop.f32.mrf.mxu0
  %v409 = vadd.f32 0.0, %v408
  %v410 = vpop.f32.mrf.mxu0
  %411 = vdwg.mxu0
  %v412 = vmul.f32 %v382, 2.0
  %v413 = vmul.f32 %v385, 2.0
  %v414 = vmul.f32 %v390, 2.0
  %v415 = vmul.f32 %v393, 2.0
  %v416 = vmul.f32 %v398, 2.0
  %v417 = vmul.f32 %v401, 2.0
  %v418 = vmul.f32 %v406, 2.0
  %v419 = vmul.f32 %v409, 2.0
  %v420 = vunpack.c.l.bf16 %v41
  %v421 = vunpack.c.l.bf16 %v42
  %v422 = vunpack.c.l.bf16 %v43
  %v423 = vunpack.c.l.bf16 %v44
  %v424 = vunpack.c.l.bf16 %v45
  %v425 = vunpack.c.l.bf16 %v46
  %v426 = vunpack.c.l.bf16 %v47
  %v427 = vunpack.c.l.bf16 %v48
  %v428 = vsub.f32 %v412, %v420
  %v429 = vsub.f32 %v413, %v421
  %v430 = vsub.f32 %v414, %v422
  %v431 = vsub.f32 %v415, %v423
  %v432 = vsub.f32 %v416, %v424
  %v433 = vsub.f32 %v417, %v425
  %v434 = vsub.f32 %v418, %v426
  %v435 = vsub.f32 %v419, %v427
  %v436 = vpack.c.bf16 %v429, %v428
  %v437 = vpack.c.bf16 %v431, %v430
  %v438 = vpack.c.bf16 %v433, %v432
  %v439 = vpack.c.bf16 %v435, %v434
  %s440 = scalar_lea.vmem %s3, 16
  %v441 = vld [vmem:[%s440] sm:$0xf]
  %v442 = vld [vmem:[%s440 + $0x4] sm:$0xf]
  %v445 = vunpack.c.l.b16 %v441
  %v446 = vunpack.c.l.b16 %v442
  %v447 = vpack.c.b16 %v446, %v445
  %v450 = vsel %vm186, %v436, 0
  %v453 = vsel %vm186, %v437, 0
  %v456 = vsel %vm186, %v438, 0
  %v459 = vsel %vm186, %v439, 0
  %461 = vmatprep.subr.bf16.mxu0 0
  %462 = vmatpush1.bf16.msra.mxu0 0
  %463 = vmatprep.subr.bf16.mxu0 0
  %464 = vmatpush1.bf16.msra.mxu0 0
  %465 = vmatprep.subr.bf16.mxu0 0
  %466 = vmatpush1.bf16.msra.mxu0 0
  %467 = vmatprep.subr.bf16.mxu0 0
  %468 = vmatpush1.bf16.msra.mxu0 0
  %469 = vmatprep.subr.bf16.mxu0 0
  %470 = vmatpush1.bf16.msra.mxu0 0
  %471 = vmatprep.subr.bf16.mxu0 0
  %472 = vmatpush1.bf16.msra.mxu0 0
  %473 = vmatprep.subr.bf16.mxu0 0
  %474 = vmatpush1.bf16.msra.mxu0 0
  %475 = vmatprep.subr.bf16.mxu0 0
  %476 = vmatpush1.bf16.msra.mxu0 %v447
  %477 = vmatprep.subr.bf16.mxu0 0
  %478 = vmatpush2.bf16.msra.mxu0 0
  %479 = vmatprep.subr.bf16.mxu0 0
  %480 = vmatpush2.bf16.msra.mxu0 0
  %481 = vmatprep.subr.bf16.mxu0 0
  %482 = vmatpush2.bf16.msra.mxu0 0
  %483 = vmatprep.subr.bf16.mxu0 0
  %484 = vmatpush2.bf16.msra.mxu0 0
  %485 = vmatprep.subr.bf16.mxu0 0
  %486 = vmatpush2.bf16.msra.mxu0 0
  %487 = vmatprep.subr.bf16.mxu0 0
  %488 = vmatpush2.bf16.msra.mxu0 0
  %489 = vmatprep.subr.bf16.mxu0 0
  %490 = vmatpush2.bf16.msra.mxu0 0
  %491 = vmatprep.subr.bf16.mxu0 0
  %492 = vmatpush2.bf16.msra.mxu0 0
  %493 = vmatprep.mubr.bf16.mxu0 0
  %494 = vmatmul.mubr.bf16.gmra.mxu0 %v450
  %v495 = vpop.f32.mrf.mxu0
  %v496 = vadd.f32 0.0, %v495
  %v497 = vpop.f32.mrf.mxu0
  %v498 = vpop.f32.mrf.mxu0
  %v499 = vadd.f32 0.0, %v498
  %v500 = vpop.f32.mrf.mxu0
  %501 = vmatprep.mubr.bf16.mxu0 0
  %502 = vmatmul.mubr.bf16.gmra.mxu0 %v453
  %v503 = vpop.f32.mrf.mxu0
  %v504 = vadd.f32 0.0, %v503
  %v505 = vpop.f32.mrf.mxu0
  %v506 = vpop.f32.mrf.mxu0
  %v507 = vadd.f32 0.0, %v506
  %v508 = vpop.f32.mrf.mxu0
  %509 = vmatprep.mubr.bf16.mxu0 0
  %510 = vmatmul.mubr.bf16.gmra.mxu0 %v456
  %v511 = vpop.f32.mrf.mxu0
  %v512 = vadd.f32 0.0, %v511
  %v513 = vpop.f32.mrf.mxu0
  %v514 = vpop.f32.mrf.mxu0
  %v515 = vadd.f32 0.0, %v514
  %v516 = vpop.f32.mrf.mxu0
  %517 = vmatprep.mubr.bf16.mxu0 0
  %518 = vmatmul.mubr.bf16.gmra.mxu0 %v459
  %v519 = vpop.f32.mrf.mxu0
  %v520 = vadd.f32 0.0, %v519
  %v521 = vpop.f32.mrf.mxu0
  %v522 = vpop.f32.mrf.mxu0
  %v523 = vadd.f32 0.0, %v522
  %v524 = vpop.f32.mrf.mxu0
  %525 = vdwg.mxu0
  %v526 = vadd.f32 %v317, %v496
  %v527 = vadd.f32 %v320, %v499
  %v528 = vadd.f32 %v325, %v504
  %v529 = vadd.f32 %v328, %v507
  %v530 = vadd.f32 %v333, %v512
  %v531 = vadd.f32 %v336, %v515
  %v532 = vadd.f32 %v341, %v520
  %v533 = vadd.f32 %v344, %v523
  %vm534 = vcmask 261120
  %v535 = vsel %vm534, %v526, 0.0
  %v536 = vsel %vm534, %v527, 0.0
  %v537 = vadd.f32 %v535, %v536
  %v538 = vsel %vm534, %v528, 0.0
  %v539 = vadd.f32 %v537, %v538
  %v540 = vsel %vm534, %v529, 0.0
  %v541 = vadd.f32 %v539, %v540
  %v542 = vsel %vm534, %v530, 0.0
  %v543 = vadd.f32 %v541, %v542
  %v544 = vsel %vm534, %v531, 0.0
  %v545 = vadd.f32 %v543, %v544
  %v546 = vsel %vm534, %v532, 0.0
  %v547 = vadd.f32 %v545, %v546
  %v548 = vsel %vm534, %v533, 0.0
  %v549 = vadd.f32 %v547, %v548
  %v550 = vrot.slane %v549, 4
  %v551 = vadd.f32 %v549, %v550
  %v552 = vrot.slane %v551, 2
  %v553 = vadd.f32 %v551, %v552
  %v554 = vrot.slane %v553, 1
  %v555 = vadd.f32 %v553, %v554
  %557 = vrot.lane.b32.xlu0 %v555, 112
  %v558 = vpop.permute.xlu0 %557
  %v560 = vadd.f32 %v555, %v558
  %v561 = vmul.f32 %v560, 0.0078125
  %563 = vrot.lane.b32.xlu0 %v561, 16
  %v564 = vpop.permute.xlu0 %563
  %v566 = vsel %vm186, %v561, %v564
  %v567 = vlaneseq
  %v568 = vshrl.u32 %v567, 7
  %v569 = vsub.s32 0, %v568
  %v570 = vrot.slane %v566, %v569
  %v571 = vsub.f32 %v526, %v570
  %v572 = vsub.f32 %v527, %v570
  %v573 = vsub.f32 %v528, %v570
  %v574 = vsub.f32 %v529, %v570
  %v575 = vsub.f32 %v530, %v570
  %v576 = vsub.f32 %v531, %v570
  %v577 = vsub.f32 %v532, %v570
  %v578 = vsub.f32 %v533, %v570
  %v579 = vmul.f32 %v571, %v571
  %v580 = vmul.f32 %v572, %v572
  %v581 = vmul.f32 %v573, %v573
  %v582 = vmul.f32 %v574, %v574
  %v583 = vmul.f32 %v575, %v575
  %v584 = vmul.f32 %v576, %v576
  %v585 = vmul.f32 %v577, %v577
  %v586 = vmul.f32 %v578, %v578
  %v587 = vsel %vm534, %v579, 0.0
  %v588 = vsel %vm534, %v580, 0.0
  %v589 = vadd.f32 %v587, %v588
  %v590 = vsel %vm534, %v581, 0.0
  %v591 = vadd.f32 %v589, %v590
  %v592 = vsel %vm534, %v582, 0.0
  %v593 = vadd.f32 %v591, %v592
  %v594 = vsel %vm534, %v583, 0.0
  %v595 = vadd.f32 %v593, %v594
  %v596 = vsel %vm534, %v584, 0.0
  %v597 = vadd.f32 %v595, %v596
  %v598 = vsel %vm534, %v585, 0.0
  %v599 = vadd.f32 %v597, %v598
  %v600 = vsel %vm534, %v586, 0.0
  %v601 = vadd.f32 %v599, %v600
  %v602 = vrot.slane %v601, 4
  %v603 = vadd.f32 %v601, %v602
  %v604 = vrot.slane %v603, 2
  %v605 = vadd.f32 %v603, %v604
  %v606 = vrot.slane %v605, 1
  %v607 = vadd.f32 %v605, %v606
  %609 = vrot.lane.b32.xlu0 %v607, 112
  %v610 = vpop.permute.xlu0 %609
  %v612 = vadd.f32 %v607, %v610
  %v613 = vmul.f32 %v612, 0.0078125
  %v614 = vld [vmem:[%s4] sm:$0x1]
  %v615 = vadd.f32 %v613, 1e-05
  %v616 = vrsqrt.pop %v615
  %v617 = vmul.f32 %v614, %v616
  %v619 = vlaneseq
  %v620 = vshrl.u32 %v619, 7
  %v621 = vsub.s32 0, %v620
  %v622 = vrot.slane %v617, %v621
  %623 = vrot.lane.b32.xlu0 %v622, 16
  %v624 = vpop.permute.xlu0 %623
  %v626 = vsel %vm186, %v617, %v624
  %v627 = vlaneseq
  %v628 = vshrl.u32 %v627, 7
  %v629 = vsub.s32 0, %v628
  %v630 = vrot.slane %v626, %v629
  %v631 = vmul.f32 %v571, %v630
  %v632 = vmul.f32 %v572, %v630
  %v633 = vmul.f32 %v573, %v630
  %v634 = vmul.f32 %v574, %v630
  %v635 = vmul.f32 %v575, %v630
  %v636 = vmul.f32 %v576, %v630
  %v637 = vmul.f32 %v577, %v630
  %v638 = vmul.f32 %v578, %v630
  %v639 = vld [vmem:[%s5] sm:$0x1]
  %v641 = vlaneseq
  %v642 = vshrl.u32 %v641, 7
  %v643 = vsub.s32 0, %v642
  %v644 = vrot.slane %v639, %v643
  %645 = vrot.lane.b32.xlu0 %v644, 16
  %v646 = vpop.permute.xlu0 %645
  %v648 = vsel %vm186, %v639, %v646
  %v649 = vlaneseq
  %v650 = vshrl.u32 %v649, 7
  %v651 = vsub.s32 0, %v650
  %v652 = vrot.slane %v648, %v651
  %v653 = vadd.f32 %v631, %v652
  %v654 = vadd.f32 %v632, %v652
  %v655 = vadd.f32 %v633, %v652
  %v656 = vadd.f32 %v634, %v652
  %v657 = vadd.f32 %v635, %v652
  %v658 = vadd.f32 %v636, %v652
  %v659 = vadd.f32 %v637, %v652
  %v660 = vadd.f32 %v638, %v652
  %v661 = vmax.f32 %v653, 0.0
  %v662 = vmax.f32 %v654, 0.0
  %v663 = vmax.f32 %v655, 0.0
  %v664 = vmax.f32 %v656, 0.0
  %v665 = vmax.f32 %v657, 0.0
  %v666 = vmax.f32 %v658, 0.0
  %v667 = vmax.f32 %v659, 0.0
  %v668 = vmax.f32 %v660, 0.0
  %v669 = vpack.c.bf16 %v662, %v661
  %v670 = vpack.c.bf16 %v664, %v663
  %v671 = vpack.c.bf16 %v666, %v665
  %v672 = vpack.c.bf16 %v668, %v667
  %v673 = vld [vmem:[%s2] sm:$0xf]
  %v674 = vld [vmem:[%s2 + $0x4] sm:$0xf]
  %v675 = vld [vmem:[%s2 + $0x8] sm:$0xf]
  %v676 = vld [vmem:[%s2 + $0xc] sm:$0xf]
  %v677 = vld [vmem:[%s2 + $0x10] sm:$0xf]
  %v678 = vld [vmem:[%s2 + $0x14] sm:$0xf]
  %v679 = vld [vmem:[%s2 + $0x18] sm:$0xf]
  %v680 = vld [vmem:[%s2 + $0x1c] sm:$0xf]
  %v689 = vunpack.c.l.b16 %v673
  %v690 = vunpack.c.l.b16 %v674
  %v691 = vunpack.c.l.b16 %v675
  %v692 = vunpack.c.l.b16 %v676
  %v693 = vunpack.c.l.b16 %v677
  %v694 = vunpack.c.l.b16 %v678
  %v695 = vunpack.c.l.b16 %v679
  %v696 = vunpack.c.l.b16 %v680
  %v697 = vpack.c.b16 %v690, %v689
  %v698 = vpack.c.b16 %v692, %v691
  %v699 = vpack.c.b16 %v694, %v693
  %v700 = vpack.c.b16 %v696, %v695
  %701 = vrot.lane.b32.xlu0 %v697, 32
  %v702 = vpop.permute.xlu0 %701
  %703 = vrot.lane.b32.xlu0 %v698, 32
  %v704 = vpop.permute.xlu0 %703
  %705 = vrot.lane.b32.xlu0 %v699, 32
  %v706 = vpop.permute.xlu0 %705
  %707 = vrot.lane.b32.xlu0 %v700, 32
  %v708 = vpop.permute.xlu0 %707
  %v711 = vsel %vm534, %v669, %v702
  %v715 = vsel %vm534, %v670, %v704
  %v719 = vsel %vm534, %v671, %v706
  %v723 = vsel %vm534, %v672, %v708
  %v725 = vld [vmem:[%s6] sm:$0xf]
  %v726 = vld [vmem:[%s6 + $0x4] sm:$0xf]
  %v727 = vld [vmem:[%s6 + $0x8] sm:$0xf]
  %v728 = vld [vmem:[%s6 + $0xc] sm:$0xf]
  %v729 = vld [vmem:[%s6 + $0x10] sm:$0xf]
  %v730 = vld [vmem:[%s6 + $0x14] sm:$0xf]
  %731 = vmatprep.subr.bf16.mxu0 0
  %732 = vmatpush1.bf16.msra.mxu0 0
  %733 = vmatprep.subr.bf16.mxu0 0
  %734 = vmatpush1.bf16.msra.mxu0 0
  %735 = vmatprep.subr.bf16.mxu0 0
  %736 = vmatpush1.bf16.msra.mxu0 0
  %737 = vmatprep.subr.bf16.mxu0 0
  %738 = vmatpush1.bf16.msra.mxu0 0
  %739 = vmatprep.subr.bf16.mxu0 0
  %740 = vmatpush1.bf16.msra.mxu0 %v723
  %741 = vmatprep.subr.bf16.mxu0 0
  %742 = vmatpush1.bf16.msra.mxu0 %v719
  %743 = vmatprep.subr.bf16.mxu0 0
  %744 = vmatpush1.bf16.msra.mxu0 %v715
  %745 = vmatprep.subr.bf16.mxu0 0
  %746 = vmatpush1.bf16.msra.mxu0 %v711
  %747 = vmatprep.subr.bf16.mxu0 0
  %748 = vmatpush2.bf16.msra.mxu0 0
  %749 = vmatprep.subr.bf16.mxu0 0
  %750 = vmatpush2.bf16.msra.mxu0 0
  %751 = vmatprep.subr.bf16.mxu0 0
  %752 = vmatpush2.bf16.msra.mxu0 0
  %753 = vmatprep.subr.bf16.mxu0 0
  %754 = vmatpush2.bf16.msra.mxu0 0
  %755 = vmatprep.subr.bf16.mxu0 0
  %756 = vmatpush2.bf16.msra.mxu0 0
  %757 = vmatprep.subr.bf16.mxu0 0
  %758 = vmatpush2.bf16.msra.mxu0 0
  %759 = vmatprep.subr.bf16.mxu0 0
  %760 = vmatpush2.bf16.msra.mxu0 0
  %761 = vmatprep.subr.bf16.mxu0 0
  %762 = vmatpush2.bf16.msra.mxu0 0
  %763 = vmatprep.mubr.bf16.mxu0 0
  %764 = vmatmul.mubr.bf16.gmra.mxu0 %v97
  %v765 = vpop.f32.mrf.mxu0
  %v766 = vadd.f32 0.0, %v765
  %v767 = vpop.f32.mrf.mxu0
  %v768 = vpop.f32.mrf.mxu0
  %v769 = vadd.f32 0.0, %v768
  %v770 = vpop.f32.mrf.mxu0
  %771 = vmatprep.mubr.bf16.mxu0 0
  %772 = vmatmul.mubr.bf16.gmra.mxu0 %v100
  %v773 = vpop.f32.mrf.mxu0
  %v774 = vadd.f32 0.0, %v773
  %v775 = vpop.f32.mrf.mxu0
  %v776 = vpop.f32.mrf.mxu0
  %v777 = vadd.f32 0.0, %v776
  %v778 = vpop.f32.mrf.mxu0
  %779 = vmatprep.mubr.bf16.mxu0 0
  %780 = vmatmul.mubr.bf16.gmra.mxu0 %v103
  %v781 = vpop.f32.mrf.mxu0
  %v782 = vadd.f32 0.0, %v781
  %v783 = vpop.f32.mrf.mxu0
  %v784 = vpop.f32.mrf.mxu0
  %v785 = vadd.f32 0.0, %v784
  %v786 = vpop.f32.mrf.mxu0
  %787 = vmatprep.mubr.bf16.mxu0 0
  %788 = vmatmul.mubr.bf16.gmra.mxu0 %v106
  %v789 = vpop.f32.mrf.mxu0
  %v790 = vadd.f32 0.0, %v789
  %v791 = vpop.f32.mrf.mxu0
  %v792 = vpop.f32.mrf.mxu0
  %v793 = vadd.f32 0.0, %v792
  %v794 = vpop.f32.mrf.mxu0
  %795 = vdwg.mxu0
  %v796 = vpack.c.bf16 %v769, %v766
  %v797 = vpack.c.bf16 %v777, %v774
  %v798 = vpack.c.bf16 %v785, %v782
  %v799 = vpack.c.bf16 %v793, %v790
  %s800 = scalar_lea.vmem %s6, 24
  %v801 = vld [vmem:[%s800] sm:$0xf]
  %v802 = vld [vmem:[%s800 + $0x4] sm:$0xf]
  %v803 = vld [vmem:[%s800 + $0x8] sm:$0xf]
  %v804 = vld [vmem:[%s800 + $0xc] sm:$0xf]
  %v805 = vld [vmem:[%s800 + $0x10] sm:$0xf]
  %v806 = vld [vmem:[%s800 + $0x14] sm:$0xf]
  %v813 = vunpack.c.l.b16 %v801
  %v814 = vunpack.c.l.b16 %v802
  %v815 = vunpack.c.l.b16 %v803
  %v816 = vunpack.c.l.b16 %v804
  %v817 = vunpack.c.l.b16 %v805
  %v818 = vunpack.c.l.b16 %v806
  %v819 = vpack.c.b16 %v814, %v813
  %v820 = vpack.c.b16 %v816, %v815
  %v821 = vpack.c.b16 %v818, %v817
  %vm825 = vcmask 392192
  %v827 = vsel %vm825, %v796, 0
  %v830 = vsel %vm825, %v797, 0
  %v833 = vsel %vm825, %v798, 0
  %v836 = vsel %vm825, %v799, 0
  %838 = vmatprep.subr.bf16.mxu0 0
  %839 = vmatpush1.bf16.msra.mxu0 0
  %840 = vmatprep.subr.bf16.mxu0 0
  %841 = vmatpush1.bf16.msra.mxu0 0
  %842 = vmatprep.subr.bf16.mxu0 0
  %843 = vmatpush1.bf16.msra.mxu0 0
  %844 = vmatprep.subr.bf16.mxu0 0
  %845 = vmatpush1.bf16.msra.mxu0 0
  %846 = vmatprep.subr.bf16.mxu0 0
  %847 = vmatpush1.bf16.msra.mxu0 0
  %848 = vmatprep.subr.bf16.mxu0 0
  %849 = vmatpush1.bf16.msra.mxu0 %v821
  %850 = vmatprep.subr.bf16.mxu0 0
  %851 = vmatpush1.bf16.msra.mxu0 %v820
  %852 = vmatprep.subr.bf16.mxu0 0
  %853 = vmatpush1.bf16.msra.mxu0 %v819
  %854 = vmatprep.subr.bf16.mxu0 0
  %855 = vmatpush2.bf16.msra.mxu0 0
  %856 = vmatprep.subr.bf16.mxu0 0
  %857 = vmatpush2.bf16.msra.mxu0 0
  %858 = vmatprep.subr.bf16.mxu0 0
  %859 = vmatpush2.bf16.msra.mxu0 0
  %860 = vmatprep.subr.bf16.mxu0 0
  %861 = vmatpush2.bf16.msra.mxu0 0
  %862 = vmatprep.subr.bf16.mxu0 0
  %863 = vmatpush2.bf16.msra.mxu0 0
  %864 = vmatprep.subr.bf16.mxu0 0
  %865 = vmatpush2.bf16.msra.mxu0 0
  %866 = vmatprep.subr.bf16.mxu0 0
  %867 = vmatpush2.bf16.msra.mxu0 0
  %868 = vmatprep.subr.bf16.mxu0 0
  %869 = vmatpush2.bf16.msra.mxu0 0
  %870 = vmatprep.mubr.bf16.mxu0 0
  %871 = vmatmul.mubr.bf16.gmra.mxu0 %v827
  %v872 = vpop.f32.mrf.mxu0
  %v873 = vadd.f32 0.0, %v872
  %v874 = vpop.f32.mrf.mxu0
  %v875 = vpop.f32.mrf.mxu0
  %v876 = vadd.f32 0.0, %v875
  %v877 = vpop.f32.mrf.mxu0
  %878 = vmatprep.mubr.bf16.mxu0 0
  %879 = vmatmul.mubr.bf16.gmra.mxu0 %v830
  %v880 = vpop.f32.mrf.mxu0
  %v881 = vadd.f32 0.0, %v880
  %v882 = vpop.f32.mrf.mxu0
  %v883 = vpop.f32.mrf.mxu0
  %v884 = vadd.f32 0.0, %v883
  %v885 = vpop.f32.mrf.mxu0
  %886 = vmatprep.mubr.bf16.mxu0 0
  %887 = vmatmul.mubr.bf16.gmra.mxu0 %v833
  %v888 = vpop.f32.mrf.mxu0
  %v889 = vadd.f32 0.0, %v888
  %v890 = vpop.f32.mrf.mxu0
  %v891 = vpop.f32.mrf.mxu0
  %v892 = vadd.f32 0.0, %v891
  %v893 = vpop.f32.mrf.mxu0
  %894 = vmatprep.mubr.bf16.mxu0 0
  %895 = vmatmul.mubr.bf16.gmra.mxu0 %v836
  %v896 = vpop.f32.mrf.mxu0
  %v897 = vadd.f32 0.0, %v896
  %v898 = vpop.f32.mrf.mxu0
  %v899 = vpop.f32.mrf.mxu0
  %v900 = vadd.f32 0.0, %v899
  %v901 = vpop.f32.mrf.mxu0
  %902 = vdwg.mxu0
  %v909 = vunpack.c.l.b16 %v725
  %v910 = vunpack.c.l.b16 %v726
  %v911 = vunpack.c.l.b16 %v727
  %v912 = vunpack.c.l.b16 %v728
  %v913 = vunpack.c.l.b16 %v729
  %v914 = vunpack.c.l.b16 %v730
  %v915 = vpack.c.b16 %v910, %v909
  %v916 = vpack.c.b16 %v912, %v911
  %v917 = vpack.c.b16 %v914, %v913
  %v921 = vsel %vm825, %v711, 0
  %v923 = vsel %vm825, %v715, 0
  %v925 = vsel %vm825, %v719, 0
  %v927 = vsel %vm825, %v723, 0
  %929 = vmatprep.subr.bf16.mxu0 0
  %930 = vmatpush1.bf16.msra.mxu0 0
  %931 = vmatprep.subr.bf16.mxu0 0
  %932 = vmatpush1.bf16.msra.mxu0 0
  %933 = vmatprep.subr.bf16.mxu0 0
  %934 = vmatpush1.bf16.msra.mxu0 0
  %935 = vmatprep.subr.bf16.mxu0 0
  %936 = vmatpush1.bf16.msra.mxu0 0
  %937 = vmatprep.subr.bf16.mxu0 0
  %938 = vmatpush1.bf16.msra.mxu0 0
  %939 = vmatprep.subr.bf16.mxu0 0
  %940 = vmatpush1.bf16.msra.mxu0 %v917
  %941 = vmatprep.subr.bf16.mxu0 0
  %942 = vmatpush1.bf16.msra.mxu0 %v916
  %943 = vmatprep.subr.bf16.mxu0 0
  %944 = vmatpush1.bf16.msra.mxu0 %v915
  %945 = vmatprep.subr.bf16.mxu0 0
  %946 = vmatpush2.bf16.msra.mxu0 0
  %947 = vmatprep.subr.bf16.mxu0 0
  %948 = vmatpush2.bf16.msra.mxu0 0
  %949 = vmatprep.subr.bf16.mxu0 0
  %950 = vmatpush2.bf16.msra.mxu0 0
  %951 = vmatprep.subr.bf16.mxu0 0
  %952 = vmatpush2.bf16.msra.mxu0 0
  %953 = vmatprep.subr.bf16.mxu0 0
  %954 = vmatpush2.bf16.msra.mxu0 0
  %955 = vmatprep.subr.bf16.mxu0 0
  %956 = vmatpush2.bf16.msra.mxu0 0
  %957 = vmatprep.subr.bf16.mxu0 0
  %958 = vmatpush2.bf16.msra.mxu0 0
  %959 = vmatprep.subr.bf16.mxu0 0
  %960 = vmatpush2.bf16.msra.mxu0 0
  %961 = vmatprep.mubr.bf16.mxu0 0
  %962 = vmatmul.mubr.bf16.gmra.mxu0 %v921
  %v963 = vpop.f32.mrf.mxu0
  %v964 = vadd.f32 %v873, %v963
  %v965 = vpop.f32.mrf.mxu0
  %v966 = vpop.f32.mrf.mxu0
  %v967 = vadd.f32 %v876, %v966
  %v968 = vpop.f32.mrf.mxu0
  %969 = vmatprep.mubr.bf16.mxu0 0
  %970 = vmatmul.mubr.bf16.gmra.mxu0 %v923
  %v971 = vpop.f32.mrf.mxu0
  %v972 = vadd.f32 %v881, %v971
  %v973 = vpop.f32.mrf.mxu0
  %v974 = vpop.f32.mrf.mxu0
  %v975 = vadd.f32 %v884, %v974
  %v976 = vpop.f32.mrf.mxu0
  %977 = vmatprep.mubr.bf16.mxu0 0
  %978 = vmatmul.mubr.bf16.gmra.mxu0 %v925
  %v979 = vpop.f32.mrf.mxu0
  %v980 = vadd.f32 %v889, %v979
  %v981 = vpop.f32.mrf.mxu0
  %v982 = vpop.f32.mrf.mxu0
  %v983 = vadd.f32 %v892, %v982
  %v984 = vpop.f32.mrf.mxu0
  %985 = vmatprep.mubr.bf16.mxu0 0
  %986 = vmatmul.mubr.bf16.gmra.mxu0 %v927
  %v987 = vpop.f32.mrf.mxu0
  %v988 = vadd.f32 %v897, %v987
  %v989 = vpop.f32.mrf.mxu0
  %v990 = vpop.f32.mrf.mxu0
  %v991 = vadd.f32 %v900, %v990
  %v992 = vpop.f32.mrf.mxu0
  %993 = vdwg.mxu0
  %994 = vmatprep.subr.bf16.mxu0 0
  %995 = vmatpush1.bf16.msra.mxu0 0
  %996 = vmatprep.subr.bf16.mxu0 0
  %997 = vmatpush1.bf16.msra.mxu0 0
  %998 = vmatprep.subr.bf16.mxu0 0
  %999 = vmatpush1.bf16.msra.mxu0 0
  %1000 = vmatprep.subr.bf16.mxu0 0
  %1001 = vmatpush1.bf16.msra.mxu0 0
  %1002 = vmatprep.subr.bf16.mxu0 0
  %1003 = vmatpush1.bf16.msra.mxu0 %v799
  %1004 = vmatprep.subr.bf16.mxu0 0
  %1005 = vmatpush1.bf16.msra.mxu0 %v798
  %1006 = vmatprep.subr.bf16.mxu0 0
  %1007 = vmatpush1.bf16.msra.mxu0 %v797
  %1008 = vmatprep.subr.bf16.mxu0 0
  %1009 = vmatpush1.bf16.msra.mxu0 %v796
  %1010 = vmatprep.subr.bf16.mxu0 0
  %1011 = vmatpush2.bf16.msra.mxu0 0
  %1012 = vmatprep.subr.bf16.mxu0 0
  %1013 = vmatpush2.bf16.msra.mxu0 0
  %1014 = vmatprep.subr.bf16.mxu0 0
  %1015 = vmatpush2.bf16.msra.mxu0 0
  %1016 = vmatprep.subr.bf16.mxu0 0
  %1017 = vmatpush2.bf16.msra.mxu0 0
  %1018 = vmatprep.subr.bf16.mxu0 0
  %1019 = vmatpush2.bf16.msra.mxu0 0
  %1020 = vmatprep.subr.bf16.mxu0 0
  %1021 = vmatpush2.bf16.msra.mxu0 0
  %1022 = vmatprep.subr.bf16.mxu0 0
  %1023 = vmatpush2.bf16.msra.mxu0 0
  %1024 = vmatprep.subr.bf16.mxu0 0
  %1025 = vmatpush2.bf16.msra.mxu0 0
  %1026 = vmatprep.mubr.bf16.mxu0 0
  %1027 = vmatmul.mubr.bf16.gmra.mxu0 %v97
  %v1028 = vpop.f32.mrf.mxu0
  %v1029 = vadd.f32 0.0, %v1028
  %v1030 = vpop.f32.mrf.mxu0
  %v1031 = vpop.f32.mrf.mxu0
  %v1032 = vadd.f32 0.0, %v1031
  %v1033 = vpop.f32.mrf.mxu0
  %1034 = vmatprep.mubr.bf16.mxu0 0
  %1035 = vmatmul.mubr.bf16.gmra.mxu0 %v100
  %v1036 = vpop.f32.mrf.mxu0
  %v1037 = vadd.f32 0.0, %v1036
  %v1038 = vpop.f32.mrf.mxu0
  %v1039 = vpop.f32.mrf.mxu0
  %v1040 = vadd.f32 0.0, %v1039
  %v1041 = vpop.f32.mrf.mxu0
  %1042 = vmatprep.mubr.bf16.mxu0 0
  %1043 = vmatmul.mubr.bf16.gmra.mxu0 %v103
  %v1044 = vpop.f32.mrf.mxu0
  %v1045 = vadd.f32 0.0, %v1044
  %v1046 = vpop.f32.mrf.mxu0
  %v1047 = vpop.f32.mrf.mxu0
  %v1048 = vadd.f32 0.0, %v1047
  %v1049 = vpop.f32.mrf.mxu0
  %1050 = vmatprep.mubr.bf16.mxu0 0
  %1051 = vmatmul.mubr.bf16.gmra.mxu0 %v106
  %v1052 = vpop.f32.mrf.mxu0
  %v1053 = vadd.f32 0.0, %v1052
  %v1054 = vpop.f32.mrf.mxu0
  %v1055 = vpop.f32.mrf.mxu0
  %v1056 = vadd.f32 0.0, %v1055
  %v1057 = vpop.f32.mrf.mxu0
  %1058 = vdwg.mxu0
  %v1059 = vmul.f32 %v1029, 2.0
  %v1060 = vmul.f32 %v1032, 2.0
  %v1061 = vmul.f32 %v1037, 2.0
  %v1062 = vmul.f32 %v1040, 2.0
  %v1063 = vmul.f32 %v1045, 2.0
  %v1064 = vmul.f32 %v1048, 2.0
  %v1065 = vmul.f32 %v1053, 2.0
  %v1066 = vmul.f32 %v1056, 2.0
  %v1067 = vunpack.c.l.bf16 %v711
  %v1068 = vunpack.c.h.bf16 %v711
  %v1069 = vunpack.c.l.bf16 %v715
  %v1070 = vunpack.c.h.bf16 %v715
  %v1071 = vunpack.c.l.bf16 %v719
  %v1072 = vunpack.c.h.bf16 %v719
  %v1073 = vunpack.c.l.bf16 %v723
  %v1074 = vunpack.c.h.bf16 %v723
  %v1075 = vsub.f32 %v1059, %v1067
  %v1076 = vsub.f32 %v1060, %v1068
  %v1077 = vsub.f32 %v1061, %v1069
  %v1078 = vsub.f32 %v1062, %v1070
  %v1079 = vsub.f32 %v1063, %v1071
  %v1080 = vsub.f32 %v1064, %v1072
  %v1081 = vsub.f32 %v1065, %v1073
  %v1082 = vsub.f32 %v1066, %v1074
  %v1083 = vpack.c.bf16 %v1076, %v1075
  %v1084 = vpack.c.bf16 %v1078, %v1077
  %v1085 = vpack.c.bf16 %v1080, %v1079
  %v1086 = vpack.c.bf16 %v1082, %v1081
  %s1087 = scalar_lea.vmem %s6, 48
  %v1088 = vld [vmem:[%s1087] sm:$0xf]
  %v1089 = vld [vmem:[%s1087 + $0x4] sm:$0xf]
  %v1090 = vld [vmem:[%s1087 + $0x8] sm:$0xf]
  %v1091 = vld [vmem:[%s1087 + $0xc] sm:$0xf]
  %v1092 = vld [vmem:[%s1087 + $0x10] sm:$0xf]
  %v1093 = vld [vmem:[%s1087 + $0x14] sm:$0xf]
  %v1100 = vunpack.c.l.b16 %v1088
  %v1101 = vunpack.c.l.b16 %v1089
  %v1102 = vunpack.c.l.b16 %v1090
  %v1103 = vunpack.c.l.b16 %v1091
  %v1104 = vunpack.c.l.b16 %v1092
  %v1105 = vunpack.c.l.b16 %v1093
  %v1106 = vpack.c.b16 %v1101, %v1100
  %v1107 = vpack.c.b16 %v1103, %v1102
  %v1108 = vpack.c.b16 %v1105, %v1104
  %v1113 = vsel %vm825, %v1083, 0
  %v1116 = vsel %vm825, %v1084, 0
  %v1119 = vsel %vm825, %v1085, 0
  %v1122 = vsel %vm825, %v1086, 0
  %1124 = vmatprep.subr.bf16.mxu0 0
  %1125 = vmatpush1.bf16.msra.mxu0 0
  %1126 = vmatprep.subr.bf16.mxu0 0
  %1127 = vmatpush1.bf16.msra.mxu0 0
  %1128 = vmatprep.subr.bf16.mxu0 0
  %1129 = vmatpush1.bf16.msra.mxu0 0
  %1130 = vmatprep.subr.bf16.mxu0 0
  %1131 = vmatpush1.bf16.msra.mxu0 0
  %1132 = vmatprep.subr.bf16.mxu0 0
  %1133 = vmatpush1.bf16.msra.mxu0 0
  %1134 = vmatprep.subr.bf16.mxu0 0
  %1135 = vmatpush1.bf16.msra.mxu0 %v1108
  %1136 = vmatprep.subr.bf16.mxu0 0
  %1137 = vmatpush1.bf16.msra.mxu0 %v1107
  %1138 = vmatprep.subr.bf16.mxu0 0
  %1139 = vmatpush1.bf16.msra.mxu0 %v1106
  %1140 = vmatprep.subr.bf16.mxu0 0
  %1141 = vmatpush2.bf16.msra.mxu0 0
  %1142 = vmatprep.subr.bf16.mxu0 0
  %1143 = vmatpush2.bf16.msra.mxu0 0
  %1144 = vmatprep.subr.bf16.mxu0 0
  %1145 = vmatpush2.bf16.msra.mxu0 0
  %1146 = vmatprep.subr.bf16.mxu0 0
  %1147 = vmatpush2.bf16.msra.mxu0 0
  %1148 = vmatprep.subr.bf16.mxu0 0
  %1149 = vmatpush2.bf16.msra.mxu0 0
  %1150 = vmatprep.subr.bf16.mxu0 0
  %1151 = vmatpush2.bf16.msra.mxu0 0
  %1152 = vmatprep.subr.bf16.mxu0 0
  %1153 = vmatpush2.bf16.msra.mxu0 0
  %1154 = vmatprep.subr.bf16.mxu0 0
  %1155 = vmatpush2.bf16.msra.mxu0 0
  %1156 = vmatprep.mubr.bf16.mxu0 0
  %1157 = vmatmul.mubr.bf16.gmra.mxu0 %v1113
  %v1158 = vpop.f32.mrf.mxu0
  %v1159 = vadd.f32 0.0, %v1158
  %v1160 = vpop.f32.mrf.mxu0
  %v1161 = vpop.f32.mrf.mxu0
  %v1162 = vadd.f32 0.0, %v1161
  %v1163 = vpop.f32.mrf.mxu0
  %1164 = vmatprep.mubr.bf16.mxu0 0
  %1165 = vmatmul.mubr.bf16.gmra.mxu0 %v1116
  %v1166 = vpop.f32.mrf.mxu0
  %v1167 = vadd.f32 0.0, %v1166
  %v1168 = vpop.f32.mrf.mxu0
  %v1169 = vpop.f32.mrf.mxu0
  %v1170 = vadd.f32 0.0, %v1169
  %v1171 = vpop.f32.mrf.mxu0
  %1172 = vmatprep.mubr.bf16.mxu0 0
  %1173 = vmatmul.mubr.bf16.gmra.mxu0 %v1119
  %v1174 = vpop.f32.mrf.mxu0
  %v1175 = vadd.f32 0.0, %v1174
  %v1176 = vpop.f32.mrf.mxu0
  %v1177 = vpop.f32.mrf.mxu0
  %v1178 = vadd.f32 0.0, %v1177
  %v1179 = vpop.f32.mrf.mxu0
  %1180 = vmatprep.mubr.bf16.mxu0 0
  %1181 = vmatmul.mubr.bf16.gmra.mxu0 %v1122
  %v1182 = vpop.f32.mrf.mxu0
  %v1183 = vadd.f32 0.0, %v1182
  %v1184 = vpop.f32.mrf.mxu0
  %v1185 = vpop.f32.mrf.mxu0
  %v1186 = vadd.f32 0.0, %v1185
  %v1187 = vpop.f32.mrf.mxu0
  %1188 = vdwg.mxu0
  %v1189 = vadd.f32 %v964, %v1159
  %v1190 = vadd.f32 %v967, %v1162
  %v1191 = vadd.f32 %v972, %v1167
  %v1192 = vadd.f32 %v975, %v1170
  %v1193 = vadd.f32 %v980, %v1175
  %v1194 = vadd.f32 %v983, %v1178
  %v1195 = vadd.f32 %v988, %v1183
  %v1196 = vadd.f32 %v991, %v1186
  %v1197 = vsel %vm534, %v1189, 0.0
  %v1198 = vsel %vm534, %v1190, 0.0
  %v1199 = vadd.f32 %v1197, %v1198
  %v1200 = vsel %vm534, %v1191, 0.0
  %v1201 = vadd.f32 %v1199, %v1200
  %v1202 = vsel %vm534, %v1192, 0.0
  %v1203 = vadd.f32 %v1201, %v1202
  %v1204 = vsel %vm534, %v1193, 0.0
  %v1205 = vadd.f32 %v1203, %v1204
  %v1206 = vsel %vm534, %v1194, 0.0
  %v1207 = vadd.f32 %v1205, %v1206
  %v1208 = vsel %vm534, %v1195, 0.0
  %v1209 = vadd.f32 %v1207, %v1208
  %v1210 = vsel %vm534, %v1196, 0.0
  %v1211 = vadd.f32 %v1209, %v1210
  %v1212 = vrot.slane %v1211, 4
  %v1213 = vadd.f32 %v1211, %v1212
  %v1214 = vrot.slane %v1213, 2
  %v1215 = vadd.f32 %v1213, %v1214
  %v1216 = vrot.slane %v1215, 1
  %v1217 = vadd.f32 %v1215, %v1216
  %1219 = vrot.lane.b32.xlu0 %v1217, 112
  %v1220 = vpop.permute.xlu0 %1219
  %v1222 = vadd.f32 %v1217, %v1220
  %v1223 = vmul.f32 %v1222, 0.0078125
  %1225 = vrot.lane.b32.xlu0 %v1223, 16
  %v1226 = vpop.permute.xlu0 %1225
  %v1228 = vsel %vm186, %v1223, %v1226
  %v1229 = vlaneseq
  %v1230 = vshrl.u32 %v1229, 7
  %v1231 = vsub.s32 0, %v1230
  %v1232 = vrot.slane %v1228, %v1231
  %v1233 = vsub.f32 %v1189, %v1232
  %v1234 = vsub.f32 %v1190, %v1232
  %v1235 = vsub.f32 %v1191, %v1232
  %v1236 = vsub.f32 %v1192, %v1232
  %v1237 = vsub.f32 %v1193, %v1232
  %v1238 = vsub.f32 %v1194, %v1232
  %v1239 = vsub.f32 %v1195, %v1232
  %v1240 = vsub.f32 %v1196, %v1232
  %v1241 = vmul.f32 %v1233, %v1233
  %v1242 = vmul.f32 %v1234, %v1234
  %v1243 = vmul.f32 %v1235, %v1235
  %v1244 = vmul.f32 %v1236, %v1236
  %v1245 = vmul.f32 %v1237, %v1237
  %v1246 = vmul.f32 %v1238, %v1238
  %v1247 = vmul.f32 %v1239, %v1239
  %v1248 = vmul.f32 %v1240, %v1240
  %v1249 = vsel %vm534, %v1241, 0.0
  %v1250 = vsel %vm534, %v1242, 0.0
  %v1251 = vadd.f32 %v1249, %v1250
  %v1252 = vsel %vm534, %v1243, 0.0
  %v1253 = vadd.f32 %v1251, %v1252
  %v1254 = vsel %vm534, %v1244, 0.0
  %v1255 = vadd.f32 %v1253, %v1254
  %v1256 = vsel %vm534, %v1245, 0.0
  %v1257 = vadd.f32 %v1255, %v1256
  %v1258 = vsel %vm534, %v1246, 0.0
  %v1259 = vadd.f32 %v1257, %v1258
  %v1260 = vsel %vm534, %v1247, 0.0
  %v1261 = vadd.f32 %v1259, %v1260
  %v1262 = vsel %vm534, %v1248, 0.0
  %v1263 = vadd.f32 %v1261, %v1262
  %v1264 = vrot.slane %v1263, 4
  %v1265 = vadd.f32 %v1263, %v1264
  %v1266 = vrot.slane %v1265, 2
  %v1267 = vadd.f32 %v1265, %v1266
  %v1268 = vrot.slane %v1267, 1
  %v1269 = vadd.f32 %v1267, %v1268
  %1271 = vrot.lane.b32.xlu0 %v1269, 112
  %v1272 = vpop.permute.xlu0 %1271
  %v1274 = vadd.f32 %v1269, %v1272
  %v1275 = vmul.f32 %v1274, 0.0078125
  %v1276 = vld [vmem:[%s7] sm:$0x1]
  %v1277 = vadd.f32 %v1275, 1e-05
  %v1278 = vrsqrt.pop %v1277
  %v1279 = vmul.f32 %v1276, %v1278
  %v1281 = vlaneseq
  %v1282 = vshrl.u32 %v1281, 7
  %v1283 = vsub.s32 0, %v1282
  %v1284 = vrot.slane %v1279, %v1283
  %1285 = vrot.lane.b32.xlu0 %v1284, 16
  %v1286 = vpop.permute.xlu0 %1285
  %v1288 = vsel %vm186, %v1279, %v1286
  %v1289 = vlaneseq
  %v1290 = vshrl.u32 %v1289, 7
  %v1291 = vsub.s32 0, %v1290
  %v1292 = vrot.slane %v1288, %v1291
  %v1293 = vmul.f32 %v1233, %v1292
  %v1294 = vmul.f32 %v1234, %v1292
  %v1295 = vmul.f32 %v1235, %v1292
  %v1296 = vmul.f32 %v1236, %v1292
  %v1297 = vmul.f32 %v1237, %v1292
  %v1298 = vmul.f32 %v1238, %v1292
  %v1299 = vmul.f32 %v1239, %v1292
  %v1300 = vmul.f32 %v1240, %v1292
  %v1301 = vld [vmem:[%s8] sm:$0x1]
  %v1303 = vlaneseq
  %v1304 = vshrl.u32 %v1303, 7
  %v1305 = vsub.s32 0, %v1304
  %v1306 = vrot.slane %v1301, %v1305
  %1307 = vrot.lane.b32.xlu0 %v1306, 16
  %v1308 = vpop.permute.xlu0 %1307
  %v1310 = vsel %vm186, %v1301, %v1308
  %v1311 = vlaneseq
  %v1312 = vshrl.u32 %v1311, 7
  %v1313 = vsub.s32 0, %v1312
  %v1314 = vrot.slane %v1310, %v1313
  %v1315 = vadd.f32 %v1293, %v1314
  %v1316 = vadd.f32 %v1294, %v1314
  %v1317 = vadd.f32 %v1295, %v1314
  %v1318 = vadd.f32 %v1296, %v1314
  %v1319 = vadd.f32 %v1297, %v1314
  %v1320 = vadd.f32 %v1298, %v1314
  %v1321 = vadd.f32 %v1299, %v1314
  %v1322 = vadd.f32 %v1300, %v1314
  %v1323 = vmax.f32 %v1315, 0.0
  %v1324 = vmax.f32 %v1316, 0.0
  %v1325 = vmax.f32 %v1317, 0.0
  %v1326 = vmax.f32 %v1318, 0.0
  %v1327 = vmax.f32 %v1319, 0.0
  %v1328 = vmax.f32 %v1320, 0.0
  %v1329 = vmax.f32 %v1321, 0.0
  %v1330 = vmax.f32 %v1322, 0.0
  %1331 = vst.msk [vmem:[%s9] sm:$0xff] %vm534, %v1323
  %1332 = vst.msk [vmem:[%s9 + $0x8] sm:$0xff] %vm534, %v1324
  %1333 = vst.msk [vmem:[%s9 + $0x10] sm:$0xff] %vm534, %v1325
  %1334 = vst.msk [vmem:[%s9 + $0x18] sm:$0xff] %vm534, %v1326
  %1335 = vst.msk [vmem:[%s9 + $0x20] sm:$0xff] %vm534, %v1327
  %1336 = vst.msk [vmem:[%s9 + $0x28] sm:$0xff] %vm534, %v1328
  %1337 = vst.msk [vmem:[%s9 + $0x30] sm:$0xff] %vm534, %v1329
  %1338 = vst.msk [vmem:[%s9 + $0x38] sm:$0xff] %vm534, %v1330
  // Predicated region
  $region38: #{tpu_custom_call.1} parent=0 // pred_check
    _
  $region39: #{tpu_custom_call.1} parent=0 // pred_check_branch
    %1340 = sbr.rel (0) target = $region41
  $region40: #{tpu_custom_call.1} parent=0 // pred_region
    _
  $region41: #{tpu_custom_call.1} parent=0 // pred_fallthru
    _
  // Predicated region
  $region42: #{tpu_custom_call.1} parent=0 // pred_check
    _
  $region43: #{tpu_custom_call.1} parent=0 // pred_check_branch
    %1342 = sbr.rel (0) target = $region45
  $region44: #{tpu_custom_call.1} parent=0 // pred_region
    _
  $region45: #{tpu_custom_call.1} parent=0 // pred_fallthru
    _

</llo_original>
